<compile_context>
chip_gen: v6e
topology: v6e:2x2x1
jax: 0.10.0
libtpu: 0.0.40
codegen_flags: <defaults>
</compile_context>

<pallas_src>
import numpy as np
import jax
import jax.numpy as jnp
from jax.experimental import pallas as pl

# ---------------- model config (small, consistent with the module) ----------
VOCAB = 64
DIM = 32
N_HEADS = 8
N_KV_HEADS = 4
HEAD_DIM = 4          # head_dim must be 4 so the module's RoPE broadcast is valid
HIDDEN = 64
N_LAYERS = 2
EPS = 1e-5
ROPE_THETA = 10000.0
B = 2
L = 8

REPEATS = N_HEADS // N_KV_HEADS
QW = N_HEADS * HEAD_DIM              # 32
KW = N_KV_HEADS * HEAD_DIM           # 16
BL = B * L                           # 16
HBL = N_HEADS * BL                   # 128  (stacked-head row count)
QKV_COLS = 2 * QW + 3 * KW           # 112  [q | q_sw | k | k_sw | v]
LAYER_W32_COLS = QKV_COLS + DIM + 2 * HIDDEN   # 272 per layer in the DIM-row slab


# ------------------------------ fused Pallas kernel --------------------------
def _mistral_kernel(tok_ref, mask_ref, rope_ref, norms_ref, w32_ref, w64_ref,
                    o_ref):
    f32 = jnp.float32
    mask = mask_ref[...]                 # (HBL, HBL) head/batch/causal blockdiag
    rope = rope_ref[...]                 # (BL, 96) = [cq | sq | ck | sk]
    cq = rope[:, 0:QW]
    sq = rope[:, QW:2 * QW]
    ck = rope[:, 2 * QW:2 * QW + KW]
    sk = rope[:, 2 * QW + KW:2 * QW + 2 * KW]
    norms = norms_ref[...]               # (2*N_LAYERS+1, DIM)
    w32 = w32_ref[...]                   # (DIM, 608)  DIM-row weight slab
    w64 = w64_ref[...]                   # (64, 96)    [emb | w2T_0 | w2T_1]

    # Token embedding as an exact one-hot matmul (keeps the gather in-kernel).
    tok = tok_ref[...]                                            # (BL, 1) int32
    vocab_ids = jax.lax.broadcasted_iota(jnp.int32, (BL, VOCAB), 1)
    onehot = (vocab_ids == tok).astype(f32)                       # (BL, VOCAB)
    h = jnp.dot(onehot, w64[:, 0:DIM], preferred_element_type=f32)  # (BL, D)

    def rms(x, w):
        ms = jnp.mean(x * x, axis=-1, keepdims=True)
        return w * (x * jax.lax.rsqrt(ms + EPS))

    for li in range(N_LAYERS):
        base = li * LAYER_W32_COLS
        wqkv = w32[:, base:base + QKV_COLS]                        # (D, 112)
        woT = w32[:, base + QKV_COLS:base + QKV_COLS + DIM]        # (D, D)
        w13 = w32[:, base + QKV_COLS + DIM:base + LAYER_W32_COLS]  # (D, 128)
        w2T = w64[:, DIM * (1 + li):DIM * (2 + li)]                # (H, D)
        anorm = norms[2 * li:2 * li + 1, :]                        # (1, D)
        fnorm = norms[2 * li + 1:2 * li + 2, :]                    # (1, D)

        # ---- attention block -------------------------------------------------
        xn = rms(h, anorm)
        # One matmul gives q (scale folded in), q_swapped, k, k_swapped, v.
        qkv = jnp.dot(xn, wqkv, preferred_element_type=f32)        # (BL, 112)
        q = qkv[:, 0:QW]
        qsw = qkv[:, QW:2 * QW]
        k = qkv[:, 2 * QW:2 * QW + KW]
        ksw = qkv[:, 2 * QW + KW:2 * QW + 2 * KW]
        v = qkv[:, 2 * QW + 2 * KW:QKV_COLS]

        # RoPE as pure VPU math (the swap came out of the matmul).
        q = q * cq + qsw * sq                                      # (BL, QW)
        k = k * ck + ksw * sk                                      # (BL, KW)

        # Stack heads along rows -> (N_HEADS*BL, HEAD_DIM) = (128, 4).
        # GQA KV sharing = duplicated pieces in the concat list (no repeat op).
        q_stk = jnp.concatenate(
            [q[:, hh * HEAD_DIM:(hh + 1) * HEAD_DIM] for hh in range(N_HEADS)],
            axis=0)
        k_stk = jnp.concatenate(
            [k[:, (hh // REPEATS) * HEAD_DIM:(hh // REPEATS + 1) * HEAD_DIM]
             for hh in range(N_HEADS)], axis=0)
        v_stk = jnp.concatenate(
            [v[:, (hh // REPEATS) * HEAD_DIM:(hh // REPEATS + 1) * HEAD_DIM]
             for hh in range(N_HEADS)], axis=0)

        # All heads / batches at once: one (128,4)x(4,128) score matmul, one
        # lane-dense 128-wide softmax, one (128,128)x(128,4) PV matmul.
        s = jax.lax.dot_general(q_stk, k_stk, (((1,), (1,)), ((), ())),
                                preferred_element_type=f32)        # (HBL, HBL)
        s = s + mask
        s = s - jnp.max(s, axis=-1, keepdims=True)
        e = jnp.exp(s)
        p = e * pl.reciprocal(jnp.sum(e, axis=-1, keepdims=True), approx=True)
        o_stk = jnp.dot(p, v_stk, preferred_element_type=f32)      # (HBL, hd)

        # Un-stack heads back to (BL, QW) — register-resident, no scratch.
        attn = jnp.concatenate(
            [o_stk[hh * BL:(hh + 1) * BL, :] for hh in range(N_HEADS)], axis=1)
        h = h + jnp.dot(attn, woT, preferred_element_type=f32)

        # ---- feed-forward block (fused w1|w3, lane-dense 128-wide output) ----
        hn = rms(h, fnorm)
        g = jnp.dot(hn, w13, preferred_element_type=f32)           # (BL, 2*H)
        g1 = g[:, :HIDDEN]
        g3 = g[:, HIDDEN:]
        act = (g1 * jax.nn.sigmoid(g1)) * g3                       # SiLU(g1)*g3
        h = h + jnp.dot(act, w2T, preferred_element_type=f32)

    hn = rms(h, norms[2 * N_LAYERS:2 * N_LAYERS + 1, :])
    out_wT = w32[:, N_LAYERS * LAYER_W32_COLS:N_LAYERS * LAYER_W32_COLS + VOCAB]
    o_ref[...] = jnp.dot(hn, out_wT,
                         preferred_element_type=f32).astype(o_ref.dtype)


# ------------------------------ host-side constants ---------------------------
def rope_constants(seq_len, head_dim, base):
    # Mirrors RoPE.create_freqs + forward (traditional, offset=0).
    n = head_dim // 2
    freqs = 1.0 / base ** (np.arange(0, n, 2, dtype=np.float32) / n)
    t = np.arange(seq_len, dtype=np.float32)
    ang = t[:, None] * freqs[None, :]
    cos_p = np.broadcast_to(np.cos(ang), (seq_len, n))   # same broadcast as torch
    sin_p = np.broadcast_to(np.sin(ang), (seq_len, n))
    C = np.stack([cos_p, -cos_p], axis=-1).reshape(seq_len, head_dim)
    S = np.stack([sin_p, sin_p], axis=-1).reshape(seq_len, head_dim)
    return C.astype(np.float32), S.astype(np.float32)


def build_big_mask(Bb, Ll, n_heads):
    # Block-diagonal over (head, batch) with a causal mask inside each block,
    # laid out for the stacked-head row order r = h*(B*L) + b*L + t.
    BLl = Bb * Ll
    i = np.arange(Ll)
    causal = np.where(i[None, :] > i[:, None], -np.inf, 0.0).astype(np.float32)
    m = np.full((n_heads * BLl, n_heads * BLl), -np.inf, np.float32)
    for hh in range(n_heads):
        for b in range(Bb):
            r0 = hh * BLl + b * Ll
            m[r0:r0 + Ll, r0:r0 + Ll] = causal
    return m


def pack_params(params):
    """Prep-time packing: fuse/permute weights and pack everything into slabs."""
    scale = HEAD_DIM ** -0.5
    C, S = rope_constants(L, HEAD_DIM, ROPE_THETA)
    rope_slab = np.concatenate(
        [np.tile(C, (B, N_HEADS)), np.tile(S, (B, N_HEADS)),
         np.tile(C, (B, N_KV_HEADS)), np.tile(S, (B, N_KV_HEADS))],
        axis=1).astype(np.float32)                                  # (BL, 96)

    # Pairwise-swap column permutations (exact, no matmul).
    swap_q = np.arange(QW).reshape(-1, 2)[:, ::-1].reshape(-1)
    swap_k = np.arange(KW).reshape(-1, 2)[:, ::-1].reshape(-1)

    w32_parts, w64_parts, norm_rows = [], [params["emb"]], []
    for lyr in params["layers"]:
        wq = lyr["wq"].T * scale                 # (D, QW), scale folded in
        wk = lyr["wk"].T                         # (D, KW)
        wqkv = jnp.concatenate(
            [wq, wq[:, swap_q], wk, wk[:, swap_k], lyr["wv"].T], axis=1)  # (D,112)
        w13 = jnp.concatenate([lyr["w1"].T, lyr["w3"].T], axis=1)         # (D,128)
        w32_parts += [wqkv, lyr["wo"].T, w13]
        w64_parts.append(lyr["w2"].T)                                     # (H, D)
        norm_rows += [lyr["attn_norm"], lyr["ffn_norm"]]
    w32_parts.append(params["out_w"].T)                                   # (D, V)
    norm_rows.append(params["norm_w"])

    return dict(
        mask=jnp.asarray(build_big_mask(B, L, N_HEADS)),   # (128, 128)
        rope=jnp.asarray(rope_slab),                       # (16, 96)
        norms=jnp.stack(norm_rows, axis=0),                # (5, 32)
        w32=jnp.concatenate(w32_parts, axis=1),            # (32, 608)
        w64=jnp.concatenate(w64_parts, axis=1),            # (64, 96)
    )


# ------------------------------ forward wrapper --------------------------------
def mistral_forward(packed, tokens):
    Bb, Ll = tokens.shape
    BLl = Bb * Ll
    logits2d = pl.pallas_call(
        _mistral_kernel,
        out_shape=jax.ShapeDtypeStruct((BLl, VOCAB), jnp.float32),
    )(tokens.reshape(BLl, 1).astype(jnp.int32),
      packed["mask"], packed["rope"], packed["norms"],
      packed["w32"], packed["w64"])
    return logits2d.reshape(Bb, Ll, VOCAB)


# ------------------------------ params ---------------------------------------
def xavier_uniform(key, shape_out_in):
    out_f, in_f = shape_out_in
    limit = float(np.sqrt(6.0 / (in_f + out_f)))
    return jax.random.uniform(key, (out_f, in_f), jnp.float32, -limit, limit)


def init_params(key):
    keys = jax.random.split(key, 2 + N_LAYERS)
    params = {
        "emb": xavier_uniform(keys[0], (VOCAB, DIM)),
        "out_w": xavier_uniform(keys[1], (VOCAB, DIM)),
        "norm_w": jnp.ones((DIM,), jnp.float32),
        "layers": [],
    }
    for layer_idx in range(N_LAYERS):
        k = jax.random.split(keys[2 + layer_idx], 7)
        params["layers"].append(dict(
            wq=xavier_uniform(k[0], (N_HEADS * HEAD_DIM, DIM)),
            wk=xavier_uniform(k[1], (N_KV_HEADS * HEAD_DIM, DIM)),
            wv=xavier_uniform(k[2], (N_KV_HEADS * HEAD_DIM, DIM)),
            wo=xavier_uniform(k[3], (DIM, N_HEADS * HEAD_DIM)),
            w1=xavier_uniform(k[4], (HIDDEN, DIM)),
            w2=xavier_uniform(k[5], (DIM, HIDDEN)),
            w3=xavier_uniform(k[6], (HIDDEN, DIM)),
            attn_norm=jnp.ones((DIM,), jnp.float32),
            ffn_norm=jnp.ones((DIM,), jnp.float32),
        ))
    return params


# ------------------------------ pure-JAX reference ---------------------------
def _ref_rmsnorm(x, w, eps=EPS):
    ms = jnp.mean(x * x, axis=-1, keepdims=True)
    return w * (x * jax.lax.rsqrt(ms + eps))


def _ref_rope(x, base=ROPE_THETA):
    hd, Ll = x.shape[-1], x.shape[2]
    n = hd // 2
    freqs = 1.0 / base ** (jnp.arange(0, n, 2, dtype=jnp.float32) / n)
    t = jnp.arange(Ll, dtype=jnp.float32)
    t_sin = jnp.sin(t[:, None] * freqs[None, :])
    t_cos = jnp.cos(t[:, None] * freqs[None, :])
    xe, xo = x[..., 0::2], x[..., 1::2]
    out = jnp.stack([xe * t_cos + xo * t_sin, xe * t_sin - xo * t_cos], axis=-1)
    return out.reshape(x.shape)


def ref_forward(params, tokens):
    hp = jax.lax.Precision.HIGHEST
    Bb, Ll = tokens.shape
    h = params["emb"][tokens]
    idx = jnp.arange(Ll)
    mask = jnp.where(idx[None, :] > idx[:, None], -jnp.inf, 0.0)
    scale = HEAD_DIM ** -0.5
    for lyr in params["layers"]:
        xn = _ref_rmsnorm(h, lyr["attn_norm"])
        q = jnp.einsum("bld,ed->ble", xn, lyr["wq"], precision=hp)
        k = jnp.einsum("bld,ed->ble", xn, lyr["wk"], precision=hp)
        v = jnp.einsum("bld,ed->ble", xn, lyr["wv"], precision=hp)
        q = q.reshape(Bb, Ll, N_HEADS, HEAD_DIM).transpose(0, 2, 1, 3)
        k = k.reshape(Bb, Ll, N_KV_HEADS, HEAD_DIM).transpose(0, 2, 1, 3)
        v = v.reshape(Bb, Ll, N_KV_HEADS, HEAD_DIM).transpose(0, 2, 1, 3)
        k = jnp.repeat(k, REPEATS, axis=1)
        v = jnp.repeat(v, REPEATS, axis=1)
        q, k = _ref_rope(q), _ref_rope(k)
        s = jnp.einsum("bhqd,bhkd->bhqk", q * scale, k, precision=hp) + mask
        p = jax.nn.softmax(s, axis=-1)
        o = jnp.einsum("bhqk,bhkd->bhqd", p, v, precision=hp)
        o = o.transpose(0, 2, 1, 3).reshape(Bb, Ll, -1)
        h = h + jnp.einsum("ble,de->bld", o, lyr["wo"], precision=hp)
        hn = _ref_rmsnorm(h, lyr["ffn_norm"])
        h1 = jnp.einsum("bld,ed->ble", hn, lyr["w1"], precision=hp)
        h3 = jnp.einsum("bld,ed->ble", hn, lyr["w3"], precision=hp)
        h = h + jnp.einsum("ble,de->bld", jax.nn.silu(h1) * h3, lyr["w2"],
                           precision=hp)
    hn = _ref_rmsnorm(h, params["norm_w"])
    return jnp.einsum("bld,vd->blv", hn, params["out_w"], precision=hp)


# ----------------------------------- main ------------------------------------
if __name__ == "__main__":
    key = jax.random.PRNGKey(0)
    pkey, tkey = jax.random.split(key)
    params = init_params(pkey)
    tokens = jax.random.randint(tkey, (B, L), 0, VOCAB, dtype=jnp.int32)

    # TODO(synk): incremental-decode KV-cache path (cache != None) not implemented;
    # only the full-sequence forward (cache=None) from Mistral.forward is covered.
    packed = pack_params(params)
    logits = jax.jit(mistral_forward)(packed, tokens)
    logits = jax.block_until_ready(logits)
    assert logits.shape == (B, L, VOCAB)

    ref = jax.block_until_ready(ref_forward(params, tokens))
    np.testing.assert_allclose(np.asarray(logits), np.asarray(ref),
                               rtol=2e-2, atol=5e-3)
    print("KERNEL_OK")
</pallas_src>

<mosaic_0001>
module attributes {stable_mosaic.version = 11 : i64} {
  func.func @_mistral_kernel(%arg0: memref<16x1xi32, #tpu.memory_space<vmem>>, %arg1: memref<128x128xf32, #tpu.memory_space<vmem>>, %arg2: memref<16x96xf32, #tpu.memory_space<vmem>>, %arg3: memref<5x32xf32, #tpu.memory_space<vmem>>, %arg4: memref<32x608xf32, #tpu.memory_space<vmem>>, %arg5: memref<64x96xf32, #tpu.memory_space<vmem>>, %arg6: memref<16x64xf32, #tpu.memory_space<vmem>>) attributes {dimension_semantics = [], scalar_prefetch = 0 : i64, scratch_operands = 0 : i64, tpu.core_type = #tpu.core_type<tc>} {
    %c0 = arith.constant 0 : index
    %c0_0 = arith.constant 0 : index
    %0 = vector.load %arg1[%c0, %c0_0] : memref<128x128xf32, #tpu.memory_space<vmem>>, vector<128x128xf32>
    %c0_1 = arith.constant 0 : index
    %c0_2 = arith.constant 0 : index
    %1 = vector.load %arg2[%c0_1, %c0_2] : memref<16x96xf32, #tpu.memory_space<vmem>>, vector<16x96xf32>
    %2 = vector.extract_strided_slice %1 {offsets = [0, 0], sizes = [16, 32], strides = [1, 1]} : vector<16x96xf32> to vector<16x32xf32>
    %3 = vector.extract_strided_slice %1 {offsets = [0, 32], sizes = [16, 32], strides = [1, 1]} : vector<16x96xf32> to vector<16x32xf32>
    %4 = vector.extract_strided_slice %1 {offsets = [0, 64], sizes = [16, 16], strides = [1, 1]} : vector<16x96xf32> to vector<16x16xf32>
    %5 = vector.extract_strided_slice %1 {offsets = [0, 80], sizes = [16, 16], strides = [1, 1]} : vector<16x96xf32> to vector<16x16xf32>
    %c0_3 = arith.constant 0 : index
    %c0_4 = arith.constant 0 : index
    %6 = vector.load %arg3[%c0_3, %c0_4] : memref<5x32xf32, #tpu.memory_space<vmem>>, vector<5x32xf32>
    %c0_5 = arith.constant 0 : index
    %c0_6 = arith.constant 0 : index
    %7 = vector.load %arg4[%c0_5, %c0_6] : memref<32x608xf32, #tpu.memory_space<vmem>>, vector<32x608xf32>
    %c0_7 = arith.constant 0 : index
    %c0_8 = arith.constant 0 : index
    %8 = vector.load %arg5[%c0_7, %c0_8] : memref<64x96xf32, #tpu.memory_space<vmem>>, vector<64x96xf32>
    %c0_9 = arith.constant 0 : index
    %c0_10 = arith.constant 0 : index
    %9 = vector.load %arg0[%c0_9, %c0_10] : memref<16x1xi32, #tpu.memory_space<vmem>>, vector<16x1xi32>
    %10 = tpu.iota {dimensions = array<i32: 1>} : vector<16x64xi32>
    %11 = vector.broadcast %9 : vector<16x1xi32> to vector<16x64xi32>
    %12 = arith.cmpi eq, %10, %11 : vector<16x64xi32>
    %13 = arith.extui %12 : vector<16x64xi1> to vector<16x64xi32>
    %14 = arith.sitofp %13 : vector<16x64xi32> to vector<16x64xf32>
    %15 = vector.extract_strided_slice %8 {offsets = [0, 0], sizes = [64, 32], strides = [1, 1]} : vector<64x96xf32> to vector<64x32xf32>
    %cst = arith.constant dense<0.000000e+00> : vector<16x32xf32>
    %16 = tpu.matmul %14, %15, %cst {dimension_numbers = #tpu.dot_dimension_numbers<[1], [0], [0], [1], [0, 0, 1, 1], [], []>} : vector<16x64xf32>, vector<64x32xf32>, vector<16x32xf32> -> vector<16x32xf32>
    %17 = vector.extract_strided_slice %7 {offsets = [0, 0], sizes = [32, 112], strides = [1, 1]} : vector<32x608xf32> to vector<32x112xf32>
    %18 = vector.extract_strided_slice %7 {offsets = [0, 112], sizes = [32, 32], strides = [1, 1]} : vector<32x608xf32> to vector<32x32xf32>
    %19 = vector.extract_strided_slice %7 {offsets = [0, 144], sizes = [32, 128], strides = [1, 1]} : vector<32x608xf32> to vector<32x128xf32>
    %20 = vector.extract_strided_slice %8 {offsets = [0, 32], sizes = [64, 32], strides = [1, 1]} : vector<64x96xf32> to vector<64x32xf32>
    %21 = vector.extract_strided_slice %6 {offsets = [0, 0], sizes = [1, 32], strides = [1, 1]} : vector<5x32xf32> to vector<1x32xf32>
    %22 = vector.extract_strided_slice %6 {offsets = [1, 0], sizes = [1, 32], strides = [1, 1]} : vector<5x32xf32> to vector<1x32xf32>
    %23 = arith.mulf %16, %16 : vector<16x32xf32>
    %cst_11 = arith.constant dense<0.000000e+00> : vector<16xf32>
    %24 = vector.multi_reduction <add>, %23, %cst_11 [1] : vector<16x32xf32> to vector<16xf32>
    %25 = vector.shape_cast %24 : vector<16xf32> to vector<16x1xf32>
    %cst_12 = arith.constant 3.200000e+01 : f32
    %26 = vector.broadcast %cst_12 : f32 to vector<16x1xf32>
    %27 = arith.divf %25, %26 : vector<16x1xf32>
    %cst_13 = arith.constant 9.99999974E-6 : f32
    %28 = vector.broadcast %cst_13 : f32 to vector<16x1xf32>
    %29 = arith.addf %27, %28 : vector<16x1xf32>
    %30 = math.rsqrt %29 : vector<16x1xf32>
    %31 = vector.broadcast %30 : vector<16x1xf32> to vector<16x32xf32>
    %32 = arith.mulf %16, %31 : vector<16x32xf32>
    %33 = vector.broadcast %21 : vector<1x32xf32> to vector<16x32xf32>
    %34 = arith.mulf %33, %32 : vector<16x32xf32>
    %cst_14 = arith.constant dense<0.000000e+00> : vector<16x112xf32>
    %35 = tpu.matmul %34, %17, %cst_14 {dimension_numbers = #tpu.dot_dimension_numbers<[1], [0], [0], [1], [0, 0, 1, 1], [], []>} : vector<16x32xf32>, vector<32x112xf32>, vector<16x112xf32> -> vector<16x112xf32>
    %36 = vector.extract_strided_slice %35 {offsets = [0, 0], sizes = [16, 32], strides = [1, 1]} : vector<16x112xf32> to vector<16x32xf32>
    %37 = vector.extract_strided_slice %35 {offsets = [0, 32], sizes = [16, 32], strides = [1, 1]} : vector<16x112xf32> to vector<16x32xf32>
    %38 = vector.extract_strided_slice %35 {offsets = [0, 64], sizes = [16, 16], strides = [1, 1]} : vector<16x112xf32> to vector<16x16xf32>
    %39 = vector.extract_strided_slice %35 {offsets = [0, 80], sizes = [16, 16], strides = [1, 1]} : vector<16x112xf32> to vector<16x16xf32>
    %40 = vector.extract_strided_slice %35 {offsets = [0, 96], sizes = [16, 16], strides = [1, 1]} : vector<16x112xf32> to vector<16x16xf32>
    %41 = arith.mulf %36, %2 : vector<16x32xf32>
    %42 = arith.mulf %37, %3 : vector<16x32xf32>
    %43 = arith.addf %41, %42 : vector<16x32xf32>
    %44 = arith.mulf %38, %4 : vector<16x16xf32>
    %45 = arith.mulf %39, %5 : vector<16x16xf32>
    %46 = arith.addf %44, %45 : vector<16x16xf32>
    %47 = vector.extract_strided_slice %43 {offsets = [0, 0], sizes = [16, 4], strides = [1, 1]} : vector<16x32xf32> to vector<16x4xf32>
    %48 = vector.extract_strided_slice %43 {offsets = [0, 4], sizes = [16, 4], strides = [1, 1]} : vector<16x32xf32> to vector<16x4xf32>
    %49 = vector.extract_strided_slice %43 {offsets = [0, 8], sizes = [16, 4], strides = [1, 1]} : vector<16x32xf32> to vector<16x4xf32>
    %50 = vector.extract_strided_slice %43 {offsets = [0, 12], sizes = [16, 4], strides = [1, 1]} : vector<16x32xf32> to vector<16x4xf32>
    %51 = vector.extract_strided_slice %43 {offsets = [0, 16], sizes = [16, 4], strides = [1, 1]} : vector<16x32xf32> to vector<16x4xf32>
    %52 = vector.extract_strided_slice %43 {offsets = [0, 20], sizes = [16, 4], strides = [1, 1]} : vector<16x32xf32> to vector<16x4xf32>
    %53 = vector.extract_strided_slice %43 {offsets = [0, 24], sizes = [16, 4], strides = [1, 1]} : vector<16x32xf32> to vector<16x4xf32>
    %54 = vector.extract_strided_slice %43 {offsets = [0, 28], sizes = [16, 4], strides = [1, 1]} : vector<16x32xf32> to vector<16x4xf32>
    %55 = tpu.concatenate %47, %48, %49, %50, %51, %52, %53, %54 in 0 : vector<16x4xf32>, vector<16x4xf32>, vector<16x4xf32>, vector<16x4xf32>, vector<16x4xf32>, vector<16x4xf32>, vector<16x4xf32>, vector<16x4xf32> -> vector<128x4xf32>
    %56 = vector.extract_strided_slice %46 {offsets = [0, 0], sizes = [16, 4], strides = [1, 1]} : vector<16x16xf32> to vector<16x4xf32>
    %57 = vector.extract_strided_slice %46 {offsets = [0, 0], sizes = [16, 4], strides = [1, 1]} : vector<16x16xf32> to vector<16x4xf32>
    %58 = vector.extract_strided_slice %46 {offsets = [0, 4], sizes = [16, 4], strides = [1, 1]} : vector<16x16xf32> to vector<16x4xf32>
    %59 = vector.extract_strided_slice %46 {offsets = [0, 4], sizes = [16, 4], strides = [1, 1]} : vector<16x16xf32> to vector<16x4xf32>
    %60 = vector.extract_strided_slice %46 {offsets = [0, 8], sizes = [16, 4], strides = [1, 1]} : vector<16x16xf32> to vector<16x4xf32>
    %61 = vector.extract_strided_slice %46 {offsets = [0, 8], sizes = [16, 4], strides = [1, 1]} : vector<16x16xf32> to vector<16x4xf32>
    %62 = vector.extract_strided_slice %46 {offsets = [0, 12], sizes = [16, 4], strides = [1, 1]} : vector<16x16xf32> to vector<16x4xf32>
    %63 = vector.extract_strided_slice %46 {offsets = [0, 12], sizes = [16, 4], strides = [1, 1]} : vector<16x16xf32> to vector<16x4xf32>
    %64 = tpu.concatenate %56, %57, %58, %59, %60, %61, %62, %63 in 0 : vector<16x4xf32>, vector<16x4xf32>, vector<16x4xf32>, vector<16x4xf32>, vector<16x4xf32>, vector<16x4xf32>, vector<16x4xf32>, vector<16x4xf32> -> vector<128x4xf32>
    %65 = vector.extract_strided_slice %40 {offsets = [0, 0], sizes = [16, 4], strides = [1, 1]} : vector<16x16xf32> to vector<16x4xf32>
    %66 = vector.extract_strided_slice %40 {offsets = [0, 0], sizes = [16, 4], strides = [1, 1]} : vector<16x16xf32> to vector<16x4xf32>
    %67 = vector.extract_strided_slice %40 {offsets = [0, 4], sizes = [16, 4], strides = [1, 1]} : vector<16x16xf32> to vector<16x4xf32>
    %68 = vector.extract_strided_slice %40 {offsets = [0, 4], sizes = [16, 4], strides = [1, 1]} : vector<16x16xf32> to vector<16x4xf32>
    %69 = vector.extract_strided_slice %40 {offsets = [0, 8], sizes = [16, 4], strides = [1, 1]} : vector<16x16xf32> to vector<16x4xf32>
    %70 = vector.extract_strided_slice %40 {offsets = [0, 8], sizes = [16, 4], strides = [1, 1]} : vector<16x16xf32> to vector<16x4xf32>
    %71 = vector.extract_strided_slice %40 {offsets = [0, 12], sizes = [16, 4], strides = [1, 1]} : vector<16x16xf32> to vector<16x4xf32>
    %72 = vector.extract_strided_slice %40 {offsets = [0, 12], sizes = [16, 4], strides = [1, 1]} : vector<16x16xf32> to vector<16x4xf32>
    %73 = tpu.concatenate %65, %66, %67, %68, %69, %70, %71, %72 in 0 : vector<16x4xf32>, vector<16x4xf32>, vector<16x4xf32>, vector<16x4xf32>, vector<16x4xf32>, vector<16x4xf32>, vector<16x4xf32>, vector<16x4xf32> -> vector<128x4xf32>
    %cst_15 = arith.constant dense<0.000000e+00> : vector<128x128xf32>
    %74 = tpu.matmul %55, %64, %cst_15 {dimension_numbers = #tpu.dot_dimension_numbers<[1], [1], [0], [0], [0, 0, 1, 0], [], []>} : vector<128x4xf32>, vector<128x4xf32>, vector<128x128xf32> -> vector<128x128xf32>
    %75 = arith.addf %74, %0 : vector<128x128xf32>
    %cst_16 = arith.constant dense<0xFF800000> : vector<128xf32>
    %76 = vector.multi_reduction <maximumf>, %75, %cst_16 [1] : vector<128x128xf32> to vector<128xf32>
    %77 = vector.shape_cast %76 : vector<128xf32> to vector<128x1xf32>
    %78 = vector.broadcast %77 : vector<128x1xf32> to vector<128x128xf32>
    %79 = arith.subf %75, %78 : vector<128x128xf32>
    %80 = math.exp %79 : vector<128x128xf32>
    %cst_17 = arith.constant dense<0.000000e+00> : vector<128xf32>
    %81 = vector.multi_reduction <add>, %80, %cst_17 [1] : vector<128x128xf32> to vector<128xf32>
    %82 = vector.shape_cast %81 : vector<128xf32> to vector<128x1xf32>
    %83 = tpu.reciprocal %82 {approx = true} : vector<128x1xf32> -> vector<128x1xf32>
    %84 = vector.broadcast %83 : vector<128x1xf32> to vector<128x128xf32>
    %85 = arith.mulf %80, %84 : vector<128x128xf32>
    %cst_18 = arith.constant dense<0.000000e+00> : vector<128x4xf32>
    %86 = tpu.matmul %85, %73, %cst_18 {dimension_numbers = #tpu.dot_dimension_numbers<[1], [0], [0], [1], [0, 0, 1, 1], [], []>} : vector<128x128xf32>, vector<128x4xf32>, vector<128x4xf32> -> vector<128x4xf32>
    %87 = vector.extract_strided_slice %86 {offsets = [0, 0], sizes = [16, 4], strides = [1, 1]} : vector<128x4xf32> to vector<16x4xf32>
    %88 = vector.extract_strided_slice %86 {offsets = [16, 0], sizes = [16, 4], strides = [1, 1]} : vector<128x4xf32> to vector<16x4xf32>
    %89 = vector.extract_strided_slice %86 {offsets = [32, 0], sizes = [16, 4], strides = [1, 1]} : vector<128x4xf32> to vector<16x4xf32>
    %90 = vector.extract_strided_slice %86 {offsets = [48, 0], sizes = [16, 4], strides = [1, 1]} : vector<128x4xf32> to vector<16x4xf32>
    %91 = vector.extract_strided_slice %86 {offsets = [64, 0], sizes = [16, 4], strides = [1, 1]} : vector<128x4xf32> to vector<16x4xf32>
    %92 = vector.extract_strided_slice %86 {offsets = [80, 0], sizes = [16, 4], strides = [1, 1]} : vector<128x4xf32> to vector<16x4xf32>
    %93 = vector.extract_strided_slice %86 {offsets = [96, 0], sizes = [16, 4], strides = [1, 1]} : vector<128x4xf32> to vector<16x4xf32>
    %94 = vector.extract_strided_slice %86 {offsets = [112, 0], sizes = [16, 4], strides = [1, 1]} : vector<128x4xf32> to vector<16x4xf32>
    %95 = tpu.concatenate %87, %88, %89, %90, %91, %92, %93, %94 in 1 : vector<16x4xf32>, vector<16x4xf32>, vector<16x4xf32>, vector<16x4xf32>, vector<16x4xf32>, vector<16x4xf32>, vector<16x4xf32>, vector<16x4xf32> -> vector<16x32xf32>
    %cst_19 = arith.constant dense<0.000000e+00> : vector<16x32xf32>
    %96 = tpu.matmul %95, %18, %cst_19 {dimension_numbers = #tpu.dot_dimension_numbers<[1], [0], [0], [1], [0, 0, 1, 1], [], []>} : vector<16x32xf32>, vector<32x32xf32>, vector<16x32xf32> -> vector<16x32xf32>
    %97 = arith.addf %16, %96 : vector<16x32xf32>
    %98 = arith.mulf %97, %97 : vector<16x32xf32>
    %cst_20 = arith.constant dense<0.000000e+00> : vector<16xf32>
    %99 = vector.multi_reduction <add>, %98, %cst_20 [1] : vector<16x32xf32> to vector<16xf32>
    %100 = vector.shape_cast %99 : vector<16xf32> to vector<16x1xf32>
    %cst_21 = arith.constant 3.200000e+01 : f32
    %101 = vector.broadcast %cst_21 : f32 to vector<16x1xf32>
    %102 = arith.divf %100, %101 : vector<16x1xf32>
    %cst_22 = arith.constant 9.99999974E-6 : f32
    %103 = vector.broadcast %cst_22 : f32 to vector<16x1xf32>
    %104 = arith.addf %102, %103 : vector<16x1xf32>
    %105 = math.rsqrt %104 : vector<16x1xf32>
    %106 = vector.broadcast %105 : vector<16x1xf32> to vector<16x32xf32>
    %107 = arith.mulf %97, %106 : vector<16x32xf32>
    %108 = vector.broadcast %22 : vector<1x32xf32> to vector<16x32xf32>
    %109 = arith.mulf %108, %107 : vector<16x32xf32>
    %cst_23 = arith.constant dense<0.000000e+00> : vector<16x128xf32>
    %110 = tpu.matmul %109, %19, %cst_23 {dimension_numbers = #tpu.dot_dimension_numbers<[1], [0], [0], [1], [0, 0, 1, 1], [], []>} : vector<16x32xf32>, vector<32x128xf32>, vector<16x128xf32> -> vector<16x128xf32>
    %111 = vector.extract_strided_slice %110 {offsets = [0, 0], sizes = [16, 64], strides = [1, 1]} : vector<16x128xf32> to vector<16x64xf32>
    %112 = vector.extract_strided_slice %110 {offsets = [0, 64], sizes = [16, 64], strides = [1, 1]} : vector<16x128xf32> to vector<16x64xf32>
    %113 = arith.negf %111 : vector<16x64xf32>
    %114 = math.exp %113 : vector<16x64xf32>
    %cst_24 = arith.constant 1.000000e+00 : f32
    %115 = vector.broadcast %cst_24 : f32 to vector<16x64xf32>
    %116 = arith.addf %115, %114 : vector<16x64xf32>
    %117 = arith.divf %115, %116 : vector<16x64xf32>
    %118 = arith.mulf %111, %117 : vector<16x64xf32>
    %119 = arith.mulf %118, %112 : vector<16x64xf32>
    %cst_25 = arith.constant dense<0.000000e+00> : vector<16x32xf32>
    %120 = tpu.matmul %119, %20, %cst_25 {dimension_numbers = #tpu.dot_dimension_numbers<[1], [0], [0], [1], [0, 0, 1, 1], [], []>} : vector<16x64xf32>, vector<64x32xf32>, vector<16x32xf32> -> vector<16x32xf32>
    %121 = arith.addf %97, %120 : vector<16x32xf32>
    %122 = vector.extract_strided_slice %7 {offsets = [0, 272], sizes = [32, 112], strides = [1, 1]} : vector<32x608xf32> to vector<32x112xf32>
    %123 = vector.extract_strided_slice %7 {offsets = [0, 384], sizes = [32, 32], strides = [1, 1]} : vector<32x608xf32> to vector<32x32xf32>
    %124 = vector.extract_strided_slice %7 {offsets = [0, 416], sizes = [32, 128], strides = [1, 1]} : vector<32x608xf32> to vector<32x128xf32>
    %125 = vector.extract_strided_slice %8 {offsets = [0, 64], sizes = [64, 32], strides = [1, 1]} : vector<64x96xf32> to vector<64x32xf32>
    %126 = vector.extract_strided_slice %6 {offsets = [2, 0], sizes = [1, 32], strides = [1, 1]} : vector<5x32xf32> to vector<1x32xf32>
    %127 = vector.extract_strided_slice %6 {offsets = [3, 0], sizes = [1, 32], strides = [1, 1]} : vector<5x32xf32> to vector<1x32xf32>
    %128 = arith.mulf %121, %121 : vector<16x32xf32>
    %cst_26 = arith.constant dense<0.000000e+00> : vector<16xf32>
    %129 = vector.multi_reduction <add>, %128, %cst_26 [1] : vector<16x32xf32> to vector<16xf32>
    %130 = vector.shape_cast %129 : vector<16xf32> to vector<16x1xf32>
    %cst_27 = arith.constant 3.200000e+01 : f32
    %131 = vector.broadcast %cst_27 : f32 to vector<16x1xf32>
    %132 = arith.divf %130, %131 : vector<16x1xf32>
    %cst_28 = arith.constant 9.99999974E-6 : f32
    %133 = vector.broadcast %cst_28 : f32 to vector<16x1xf32>
    %134 = arith.addf %132, %133 : vector<16x1xf32>
    %135 = math.rsqrt %134 : vector<16x1xf32>
    %136 = vector.broadcast %135 : vector<16x1xf32> to vector<16x32xf32>
    %137 = arith.mulf %121, %136 : vector<16x32xf32>
    %138 = vector.broadcast %126 : vector<1x32xf32> to vector<16x32xf32>
    %139 = arith.mulf %138, %137 : vector<16x32xf32>
    %cst_29 = arith.constant dense<0.000000e+00> : vector<16x112xf32>
    %140 = tpu.matmul %139, %122, %cst_29 {dimension_numbers = #tpu.dot_dimension_numbers<[1], [0], [0], [1], [0, 0, 1, 1], [], []>} : vector<16x32xf32>, vector<32x112xf32>, vector<16x112xf32> -> vector<16x112xf32>
    %141 = vector.extract_strided_slice %140 {offsets = [0, 0], sizes = [16, 32], strides = [1, 1]} : vector<16x112xf32> to vector<16x32xf32>
    %142 = vector.extract_strided_slice %140 {offsets = [0, 32], sizes = [16, 32], strides = [1, 1]} : vector<16x112xf32> to vector<16x32xf32>
    %143 = vector.extract_strided_slice %140 {offsets = [0, 64], sizes = [16, 16], strides = [1, 1]} : vector<16x112xf32> to vector<16x16xf32>
    %144 = vector.extract_strided_slice %140 {offsets = [0, 80], sizes = [16, 16], strides = [1, 1]} : vector<16x112xf32> to vector<16x16xf32>
    %145 = vector.extract_strided_slice %140 {offsets = [0, 96], sizes = [16, 16], strides = [1, 1]} : vector<16x112xf32> to vector<16x16xf32>
    %146 = arith.mulf %141, %2 : vector<16x32xf32>
    %147 = arith.mulf %142, %3 : vector<16x32xf32>
    %148 = arith.addf %146, %147 : vector<16x32xf32>
    %149 = arith.mulf %143, %4 : vector<16x16xf32>
    %150 = arith.mulf %144, %5 : vector<16x16xf32>
    %151 = arith.addf %149, %150 : vector<16x16xf32>
    %152 = vector.extract_strided_slice %148 {offsets = [0, 0], sizes = [16, 4], strides = [1, 1]} : vector<16x32xf32> to vector<16x4xf32>
    %153 = vector.extract_strided_slice %148 {offsets = [0, 4], sizes = [16, 4], strides = [1, 1]} : vector<16x32xf32> to vector<16x4xf32>
    %154 = vector.extract_strided_slice %148 {offsets = [0, 8], sizes = [16, 4], strides = [1, 1]} : vector<16x32xf32> to vector<16x4xf32>
    %155 = vector.extract_strided_slice %148 {offsets = [0, 12], sizes = [16, 4], strides = [1, 1]} : vector<16x32xf32> to vector<16x4xf32>
    %156 = vector.extract_strided_slice %148 {offsets = [0, 16], sizes = [16, 4], strides = [1, 1]} : vector<16x32xf32> to vector<16x4xf32>
    %157 = vector.extract_strided_slice %148 {offsets = [0, 20], sizes = [16, 4], strides = [1, 1]} : vector<16x32xf32> to vector<16x4xf32>
    %158 = vector.extract_strided_slice %148 {offsets = [0, 24], sizes = [16, 4], strides = [1, 1]} : vector<16x32xf32> to vector<16x4xf32>
    %159 = vector.extract_strided_slice %148 {offsets = [0, 28], sizes = [16, 4], strides = [1, 1]} : vector<16x32xf32> to vector<16x4xf32>
    %160 = tpu.concatenate %152, %153, %154, %155, %156, %157, %158, %159 in 0 : vector<16x4xf32>, vector<16x4xf32>, vector<16x4xf32>, vector<16x4xf32>, vector<16x4xf32>, vector<16x4xf32>, vector<16x4xf32>, vector<16x4xf32> -> vector<128x4xf32>
    %161 = vector.extract_strided_slice %151 {offsets = [0, 0], sizes = [16, 4], strides = [1, 1]} : vector<16x16xf32> to vector<16x4xf32>
    %162 = vector.extract_strided_slice %151 {offsets = [0, 0], sizes = [16, 4], strides = [1, 1]} : vector<16x16xf32> to vector<16x4xf32>
    %163 = vector.extract_strided_slice %151 {offsets = [0, 4], sizes = [16, 4], strides = [1, 1]} : vector<16x16xf32> to vector<16x4xf32>
    %164 = vector.extract_strided_slice %151 {offsets = [0, 4], sizes = [16, 4], strides = [1, 1]} : vector<16x16xf32> to vector<16x4xf32>
    %165 = vector.extract_strided_slice %151 {offsets = [0, 8], sizes = [16, 4], strides = [1, 1]} : vector<16x16xf32> to vector<16x4xf32>
    %166 = vector.extract_strided_slice %151 {offsets = [0, 8], sizes = [16, 4], strides = [1, 1]} : vector<16x16xf32> to vector<16x4xf32>
    %167 = vector.extract_strided_slice %151 {offsets = [0, 12], sizes = [16, 4], strides = [1, 1]} : vector<16x16xf32> to vector<16x4xf32>
    %168 = vector.extract_strided_slice %151 {offsets = [0, 12], sizes = [16, 4], strides = [1, 1]} : vector<16x16xf32> to vector<16x4xf32>
    %169 = tpu.concatenate %161, %162, %163, %164, %165, %166, %167, %168 in 0 : vector<16x4xf32>, vector<16x4xf32>, vector<16x4xf32>, vector<16x4xf32>, vector<16x4xf32>, vector<16x4xf32>, vector<16x4xf32>, vector<16x4xf32> -> vector<128x4xf32>
    %170 = vector.extract_strided_slice %145 {offsets = [0, 0], sizes = [16, 4], strides = [1, 1]} : vector<16x16xf32> to vector<16x4xf32>
    %171 = vector.extract_strided_slice %145 {offsets = [0, 0], sizes = [16, 4], strides = [1, 1]} : vector<16x16xf32> to vector<16x4xf32>
    %172 = vector.extract_strided_slice %145 {offsets = [0, 4], sizes = [16, 4], strides = [1, 1]} : vector<16x16xf32> to vector<16x4xf32>
    %173 = vector.extract_strided_slice %145 {offsets = [0, 4], sizes = [16, 4], strides = [1, 1]} : vector<16x16xf32> to vector<16x4xf32>
    %174 = vector.extract_strided_slice %145 {offsets = [0, 8], sizes = [16, 4], strides = [1, 1]} : vector<16x16xf32> to vector<16x4xf32>
    %175 = vector.extract_strided_slice %145 {offsets = [0, 8], sizes = [16, 4], strides = [1, 1]} : vector<16x16xf32> to vector<16x4xf32>
    %176 = vector.extract_strided_slice %145 {offsets = [0, 12], sizes = [16, 4], strides = [1, 1]} : vector<16x16xf32> to vector<16x4xf32>
    %177 = vector.extract_strided_slice %145 {offsets = [0, 12], sizes = [16, 4], strides = [1, 1]} : vector<16x16xf32> to vector<16x4xf32>
    %178 = tpu.concatenate %170, %171, %172, %173, %174, %175, %176, %177 in 0 : vector<16x4xf32>, vector<16x4xf32>, vector<16x4xf32>, vector<16x4xf32>, vector<16x4xf32>, vector<16x4xf32>, vector<16x4xf32>, vector<16x4xf32> -> vector<128x4xf32>
    %cst_30 = arith.constant dense<0.000000e+00> : vector<128x128xf32>
    %179 = tpu.matmul %160, %169, %cst_30 {dimension_numbers = #tpu.dot_dimension_numbers<[1], [1], [0], [0], [0, 0, 1, 0], [], []>} : vector<128x4xf32>, vector<128x4xf32>, vector<128x128xf32> -> vector<128x128xf32>
    %180 = arith.addf %179, %0 : vector<128x128xf32>
    %cst_31 = arith.constant dense<0xFF800000> : vector<128xf32>
    %181 = vector.multi_reduction <maximumf>, %180, %cst_31 [1] : vector<128x128xf32> to vector<128xf32>
    %182 = vector.shape_cast %181 : vector<128xf32> to vector<128x1xf32>
    %183 = vector.broadcast %182 : vector<128x1xf32> to vector<128x128xf32>
    %184 = arith.subf %180, %183 : vector<128x128xf32>
    %185 = math.exp %184 : vector<128x128xf32>
    %cst_32 = arith.constant dense<0.000000e+00> : vector<128xf32>
    %186 = vector.multi_reduction <add>, %185, %cst_32 [1] : vector<128x128xf32> to vector<128xf32>
    %187 = vector.shape_cast %186 : vector<128xf32> to vector<128x1xf32>
    %188 = tpu.reciprocal %187 {approx = true} : vector<128x1xf32> -> vector<128x1xf32>
    %189 = vector.broadcast %188 : vector<128x1xf32> to vector<128x128xf32>
    %190 = arith.mulf %185, %189 : vector<128x128xf32>
    %cst_33 = arith.constant dense<0.000000e+00> : vector<128x4xf32>
    %191 = tpu.matmul %190, %178, %cst_33 {dimension_numbers = #tpu.dot_dimension_numbers<[1], [0], [0], [1], [0, 0, 1, 1], [], []>} : vector<128x128xf32>, vector<128x4xf32>, vector<128x4xf32> -> vector<128x4xf32>
    %192 = vector.extract_strided_slice %191 {offsets = [0, 0], sizes = [16, 4], strides = [1, 1]} : vector<128x4xf32> to vector<16x4xf32>
    %193 = vector.extract_strided_slice %191 {offsets = [16, 0], sizes = [16, 4], strides = [1, 1]} : vector<128x4xf32> to vector<16x4xf32>
    %194 = vector.extract_strided_slice %191 {offsets = [32, 0], sizes = [16, 4], strides = [1, 1]} : vector<128x4xf32> to vector<16x4xf32>
    %195 = vector.extract_strided_slice %191 {offsets = [48, 0], sizes = [16, 4], strides = [1, 1]} : vector<128x4xf32> to vector<16x4xf32>
    %196 = vector.extract_strided_slice %191 {offsets = [64, 0], sizes = [16, 4], strides = [1, 1]} : vector<128x4xf32> to vector<16x4xf32>
    %197 = vector.extract_strided_slice %191 {offsets = [80, 0], sizes = [16, 4], strides = [1, 1]} : vector<128x4xf32> to vector<16x4xf32>
    %198 = vector.extract_strided_slice %191 {offsets = [96, 0], sizes = [16, 4], strides = [1, 1]} : vector<128x4xf32> to vector<16x4xf32>
    %199 = vector.extract_strided_slice %191 {offsets = [112, 0], sizes = [16, 4], strides = [1, 1]} : vector<128x4xf32> to vector<16x4xf32>
    %200 = tpu.concatenate %192, %193, %194, %195, %196, %197, %198, %199 in 1 : vector<16x4xf32>, vector<16x4xf32>, vector<16x4xf32>, vector<16x4xf32>, vector<16x4xf32>, vector<16x4xf32>, vector<16x4xf32>, vector<16x4xf32> -> vector<16x32xf32>
    %cst_34 = arith.constant dense<0.000000e+00> : vector<16x32xf32>
    %201 = tpu.matmul %200, %123, %cst_34 {dimension_numbers = #tpu.dot_dimension_numbers<[1], [0], [0], [1], [0, 0, 1, 1], [], []>} : vector<16x32xf32>, vector<32x32xf32>, vector<16x32xf32> -> vector<16x32xf32>
    %202 = arith.addf %121, %201 : vector<16x32xf32>
    %203 = arith.mulf %202, %202 : vector<16x32xf32>
    %cst_35 = arith.constant dense<0.000000e+00> : vector<16xf32>
    %204 = vector.multi_reduction <add>, %203, %cst_35 [1] : vector<16x32xf32> to vector<16xf32>
    %205 = vector.shape_cast %204 : vector<16xf32> to vector<16x1xf32>
    %cst_36 = arith.constant 3.200000e+01 : f32
    %206 = vector.broadcast %cst_36 : f32 to vector<16x1xf32>
    %207 = arith.divf %205, %206 : vector<16x1xf32>
    %cst_37 = arith.constant 9.99999974E-6 : f32
    %208 = vector.broadcast %cst_37 : f32 to vector<16x1xf32>
    %209 = arith.addf %207, %208 : vector<16x1xf32>
    %210 = math.rsqrt %209 : vector<16x1xf32>
    %211 = vector.broadcast %210 : vector<16x1xf32> to vector<16x32xf32>
    %212 = arith.mulf %202, %211 : vector<16x32xf32>
    %213 = vector.broadcast %127 : vector<1x32xf32> to vector<16x32xf32>
    %214 = arith.mulf %213, %212 : vector<16x32xf32>
    %cst_38 = arith.constant dense<0.000000e+00> : vector<16x128xf32>
    %215 = tpu.matmul %214, %124, %cst_38 {dimension_numbers = #tpu.dot_dimension_numbers<[1], [0], [0], [1], [0, 0, 1, 1], [], []>} : vector<16x32xf32>, vector<32x128xf32>, vector<16x128xf32> -> vector<16x128xf32>
    %216 = vector.extract_strided_slice %215 {offsets = [0, 0], sizes = [16, 64], strides = [1, 1]} : vector<16x128xf32> to vector<16x64xf32>
    %217 = vector.extract_strided_slice %215 {offsets = [0, 64], sizes = [16, 64], strides = [1, 1]} : vector<16x128xf32> to vector<16x64xf32>
    %218 = arith.negf %216 : vector<16x64xf32>
    %219 = math.exp %218 : vector<16x64xf32>
    %cst_39 = arith.constant 1.000000e+00 : f32
    %220 = vector.broadcast %cst_39 : f32 to vector<16x64xf32>
    %221 = arith.addf %220, %219 : vector<16x64xf32>
    %222 = arith.divf %220, %221 : vector<16x64xf32>
    %223 = arith.mulf %216, %222 : vector<16x64xf32>
    %224 = arith.mulf %223, %217 : vector<16x64xf32>
    %cst_40 = arith.constant dense<0.000000e+00> : vector<16x32xf32>
    %225 = tpu.matmul %224, %125, %cst_40 {dimension_numbers = #tpu.dot_dimension_numbers<[1], [0], [0], [1], [0, 0, 1, 1], [], []>} : vector<16x64xf32>, vector<64x32xf32>, vector<16x32xf32> -> vector<16x32xf32>
    %226 = arith.addf %202, %225 : vector<16x32xf32>
    %227 = vector.extract_strided_slice %6 {offsets = [4, 0], sizes = [1, 32], strides = [1, 1]} : vector<5x32xf32> to vector<1x32xf32>
    %228 = arith.mulf %226, %226 : vector<16x32xf32>
    %cst_41 = arith.constant dense<0.000000e+00> : vector<16xf32>
    %229 = vector.multi_reduction <add>, %228, %cst_41 [1] : vector<16x32xf32> to vector<16xf32>
    %230 = vector.shape_cast %229 : vector<16xf32> to vector<16x1xf32>
    %cst_42 = arith.constant 3.200000e+01 : f32
    %231 = vector.broadcast %cst_42 : f32 to vector<16x1xf32>
    %232 = arith.divf %230, %231 : vector<16x1xf32>
    %cst_43 = arith.constant 9.99999974E-6 : f32
    %233 = vector.broadcast %cst_43 : f32 to vector<16x1xf32>
    %234 = arith.addf %232, %233 : vector<16x1xf32>
    %235 = math.rsqrt %234 : vector<16x1xf32>
    %236 = vector.broadcast %235 : vector<16x1xf32> to vector<16x32xf32>
    %237 = arith.mulf %226, %236 : vector<16x32xf32>
    %238 = vector.broadcast %227 : vector<1x32xf32> to vector<16x32xf32>
    %239 = arith.mulf %238, %237 : vector<16x32xf32>
    %240 = vector.extract_strided_slice %7 {offsets = [0, 544], sizes = [32, 64], strides = [1, 1]} : vector<32x608xf32> to vector<32x64xf32>
    %cst_44 = arith.constant dense<0.000000e+00> : vector<16x64xf32>
    %241 = tpu.matmul %239, %240, %cst_44 {dimension_numbers = #tpu.dot_dimension_numbers<[1], [0], [0], [1], [0, 0, 1, 1], [], []>} : vector<16x32xf32>, vector<32x64xf32>, vector<16x64xf32> -> vector<16x64xf32>
    %c0_45 = arith.constant 0 : index
    %c0_46 = arith.constant 0 : index
    %242 = vector.load %arg6[%c0_45, %c0_46] : memref<16x64xf32, #tpu.memory_space<vmem>>, vector<16x64xf32>
    tpu.vector_store %arg6[%c0_45, %c0_46], %241 {strides = array<i32>} : memref<16x64xf32, #tpu.memory_space<vmem>>, vector<16x64xf32>,
    return
  }
}

</mosaic_0001>

<llo_original>
// kernel: mistral_forward.1
$region0: #{mistral_forward.1}
  #allocation0 [shape = 'u32[]', space=smem, size = 0x4, offset = 0x4, fixed_abs, tag = 'smem constant byte address 0x4 - core index']
  #allocation1 [shape = 'u32[144,128]{1,0:T(1,128)}', space=vmem, size = 0x12000, scoped, tag = 'internal scratch']
  %s0 = inlined_call_operand.vmem [shape: s32[16,1], index: 0, kind: input, shape index: {}]
  %s1 = inlined_call_operand.hbm [shape: f32[128,128], index: 1, kind: input, shape index: {}]
  %s2 = inlined_call_operand.vmem [shape: f32[16,96], index: 2, kind: input, shape index: {}]
  %s3 = inlined_call_operand.hbm [shape: f32[5,32], index: 3, kind: input, shape index: {}]
  %s4 = inlined_call_operand.hbm [shape: f32[32,608], index: 4, kind: input, shape index: {}]
  %s5 = inlined_call_operand.hbm [shape: f32[64,96], index: 5, kind: input, shape index: {}]
  %s6 = inlined_call_operand.hbm [shape: f32[16,64], index: 6, kind: output, shape index: {}]
  %s7 = sld [smem:[#allocation0]]
  $region50: #{mistral_forward.1} parent=0
    _
  %s9 = ssub.s32 1, %s7
  %s10 = scalar_select 0, %s9, %s7
  $region1: #{mistral_forward.1} parent=0
    #allocation2 [shape = 'u8[65536]{0}', space=vmem, size = 0x10000, scoped, tag = 'input window, operand 1, single buffered']
    #allocation3 [shape = 's32[1]{0}', space=sflag, size = 0x4, scoped, tag = 'scoped memory for mistral_forward.1']
    #allocation4 [shape = 's32[1]{0}', space=sflag, size = 0x4, scoped, tag = 'scoped memory for mistral_forward.1']
    #allocation5 [shape = 'u8[4096]{0}', space=vmem, size = 0x1000, scoped, tag = 'input window, operand 3, single buffered']
    #allocation6 [shape = 's32[1]{0}', space=sflag, size = 0x4, scoped, tag = 'scoped memory for mistral_forward.1']
    #allocation7 [shape = 'u8[81920]{0}', space=vmem, size = 0x14000, scoped, tag = 'input window, operand 4, single buffered']
    #allocation8 [shape = 'u8[32768]{0}', space=vmem, size = 0x8000, scoped, tag = 'input window, operand 5, single buffered']
    #allocation9 [shape = 's32[1]{0}', space=sflag, size = 0x4, scoped, tag = 'scoped memory for mistral_forward.1']
    #allocation10 [shape = 'u8[8192]{0}', space=vmem, size = 0x2000, scoped, tag = 'output window, operand 0, single buffered']
    %11 = vsyncpa [#allocation3], 0
    %12 = vsyncpa [#allocation6], 0
    %13 = vsyncpa [#allocation9], 0
    %14 = vsyncpa [#allocation4], 0
    // Predicated region
    $region2: #{mistral_forward.1} parent=1 // pred_check
      _
    $region3: #{mistral_forward.1} parent=1 // pred_check_branch
      %16 = sbr.rel (0) target = $region5
    $region4: #{mistral_forward.1} parent=1 // pred_region
      _
    $region5: #{mistral_forward.1} parent=1 // pred_fallthru
      _
    // Predicated region
    $region6: #{mistral_forward.1} parent=1 // pred_check
      _
    $region7: #{mistral_forward.1} parent=1 // pred_check_branch
      %18 = sbr.rel (0) target = $region9
    $region8: #{mistral_forward.1} parent=1 // pred_region
      %s20 = ssub.s32 2048, 2048
      %21 = vsyncadd [#allocation3], %s20
      %s22 = sshll.u32 [#allocation2], 4
      %s23 = int_to_ptr.vmem [resolvable:$true] %s22
      %28 = dma.hbm_to_vmem [thread:$0]  %s1, 2048, %s23, [#allocation3], 128, 128, 8
    $region9: #{mistral_forward.1} parent=1 // pred_fallthru
      _
    // Predicated region
    $region10: #{mistral_forward.1} parent=1 // pred_check
      _
    $region11: #{mistral_forward.1} parent=1 // pred_check_branch
      %30 = sbr.rel (0) target = $region13
    $region12: #{mistral_forward.1} parent=1 // pred_region
      _
    $region13: #{mistral_forward.1} parent=1 // pred_fallthru
      _
    // Predicated region
    $region14: #{mistral_forward.1} parent=1 // pred_check
      _
    $region15: #{mistral_forward.1} parent=1 // pred_check_branch
      %32 = sbr.rel (0) target = $region17
    $region16: #{mistral_forward.1} parent=1 // pred_region
      %s34 = ssub.s32 128, 128
      %35 = vsyncadd [#allocation6], %s34
      %s37 = sshll.u32 [#allocation5], 4
      %s38 = int_to_ptr.vmem [resolvable:$true] %s37
      %40 = dma.hbm_to_vmem [thread:$0]  %s3, 128, %s38, [#allocation6]
    $region17: #{mistral_forward.1} parent=1 // pred_fallthru
      _
    // Predicated region
    $region18: #{mistral_forward.1} parent=1 // pred_check
      _
    $region19: #{mistral_forward.1} parent=1 // pred_check_branch
      %42 = sbr.rel (0) target = $region21
    $region20: #{mistral_forward.1} parent=1 // pred_region
      %s44 = ssub.s32 2560, 2560
      %45 = vsyncadd [#allocation6], %s44
      %s46 = sshll.u32 [#allocation7], 4
      %s47 = int_to_ptr.vmem [resolvable:$true] %s46
      %52 = dma.hbm_to_vmem [thread:$0]  %s4, 2560, %s47, [#allocation6], 640, 640, 40
    $region21: #{mistral_forward.1} parent=1 // pred_fallthru
      _
    // Predicated region
    $region22: #{mistral_forward.1} parent=1 // pred_check
      _
    $region23: #{mistral_forward.1} parent=1 // pred_check_branch
      %54 = sbr.rel (0) target = $region25
    $region24: #{mistral_forward.1} parent=1 // pred_region
      %s56 = ssub.s32 1024, 1024
      %57 = vsyncadd [#allocation9], %s56
      %s58 = sshll.u32 [#allocation8], 4
      %s59 = int_to_ptr.vmem [resolvable:$true] %s58
      %64 = dma.hbm_to_vmem [thread:$0]  %s5, 1024, %s59, [#allocation9], 128, 128, 8
    $region25: #{mistral_forward.1} parent=1 // pred_fallthru
      _
    // Predicated region
    $region26: #{mistral_forward.1} parent=1 // pred_check
      _
    $region27: #{mistral_forward.1} parent=1 // pred_check_branch
      %66 = sbr.rel (0) target = $region29
    $region28: #{mistral_forward.1} parent=1 // pred_region
      %67 = dma.done [#allocation3], 2048
    $region29: #{mistral_forward.1} parent=1 // pred_fallthru
      _
    // Predicated region
    $region30: #{mistral_forward.1} parent=1 // pred_check
      _
    $region31: #{mistral_forward.1} parent=1 // pred_check_branch
      %69 = sbr.rel (0) target = $region33
    $region32: #{mistral_forward.1} parent=1 // pred_region
      %70 = dma.done [#allocation6], 128
    $region33: #{mistral_forward.1} parent=1 // pred_fallthru
      _
    // Predicated region
    $region34: #{mistral_forward.1} parent=1 // pred_check
      _
    $region35: #{mistral_forward.1} parent=1 // pred_check_branch
      %72 = sbr.rel (0) target = $region37
    $region36: #{mistral_forward.1} parent=1 // pred_region
      %73 = dma.done [#allocation6], 2560
    $region37: #{mistral_forward.1} parent=1 // pred_fallthru
      _
    // Predicated region
    $region38: #{mistral_forward.1} parent=1 // pred_check
      _
    $region39: #{mistral_forward.1} parent=1 // pred_check_branch
      %75 = sbr.rel (0) target = $region41
    $region40: #{mistral_forward.1} parent=1 // pred_region
      %76 = dma.done [#allocation9], 1024
    $region41: #{mistral_forward.1} parent=1 // pred_fallthru
      _
    %v77 = vld [vmem:[#allocation2] sm:$0xff]
    %v78 = vld [vmem:[#allocation2 + $0x8] sm:$0xff]
    %v79 = vld [vmem:[#allocation2 + $0x10] sm:$0xff]
    %v80 = vld [vmem:[#allocation2 + $0x18] sm:$0xff]
    %v81 = vld [vmem:[#allocation2 + $0x20] sm:$0xff]
    %v82 = vld [vmem:[#allocation2 + $0x28] sm:$0xff]
    %v83 = vld [vmem:[#allocation2 + $0x30] sm:$0xff]
    %v84 = vld [vmem:[#allocation2 + $0x38] sm:$0xff]
    %v85 = vld [vmem:[#allocation2 + $0x40] sm:$0xff]
    %v86 = vld [vmem:[#allocation2 + $0x48] sm:$0xff]
    %v87 = vld [vmem:[#allocation2 + $0x50] sm:$0xff]
    %v88 = vld [vmem:[#allocation2 + $0x58] sm:$0xff]
    %v89 = vld [vmem:[#allocation2 + $0x60] sm:$0xff]
    %v90 = vld [vmem:[#allocation2 + $0x68] sm:$0xff]
    %v91 = vld [vmem:[#allocation2 + $0x70] sm:$0xff]
    %v92 = vld [vmem:[#allocation2 + $0x78] sm:$0xff]
    %v93 = vld [vmem:[%s2] sm:$0xff]
    %v94 = vld [vmem:[%s2 + $0x8] sm:$0xff]
    %v95 = vld [vmem:[#allocation5] sm:$0x1f]
    %v96 = vld [vmem:[#allocation7] sm:$0xff]
    %v97 = vld [vmem:[#allocation7 + $0x8] sm:$0xff]
    %v98 = vld [vmem:[#allocation7 + $0x10] sm:$0xff]
    %v99 = vld [vmem:[#allocation7 + $0x18] sm:$0xff]
    %v100 = vld [vmem:[#allocation7 + $0x20] sm:$0xff]
    %v101 = vld [vmem:[#allocation7 + $0x28] sm:$0xff]
    %v102 = vld [vmem:[#allocation7 + $0x30] sm:$0xff]
    %v103 = vld [vmem:[#allocation7 + $0x38] sm:$0xff]
    %v104 = vld [vmem:[#allocation7 + $0x40] sm:$0xff]
    %v105 = vld [vmem:[#allocation7 + $0x48] sm:$0xff]
    %v106 = vld [vmem:[#allocation7 + $0x50] sm:$0xff]
    %v107 = vld [vmem:[#allocation7 + $0x58] sm:$0xff]
    %v108 = vld [vmem:[#allocation7 + $0x60] sm:$0xff]
    %v109 = vld [vmem:[#allocation7 + $0x68] sm:$0xff]
    %v110 = vld [vmem:[#allocation7 + $0x70] sm:$0xff]
    %v111 = vld [vmem:[#allocation7 + $0x78] sm:$0xff]
    %v112 = vld [vmem:[#allocation7 + $0x80] sm:$0xff]
    %v113 = vld [vmem:[#allocation7 + $0x88] sm:$0xff]
    %v114 = vld [vmem:[#allocation7 + $0x90] sm:$0xff]
    %v115 = vld [vmem:[#allocation7 + $0x98] sm:$0xff]
    %v116 = vld [vmem:[#allocation8] sm:$0xff]
    %v117 = vld [vmem:[#allocation8 + $0x8] sm:$0xff]
    %v118 = vld [vmem:[#allocation8 + $0x10] sm:$0xff]
    %v119 = vld [vmem:[#allocation8 + $0x18] sm:$0xff]
    %v120 = vld [vmem:[#allocation8 + $0x20] sm:$0xff]
    %v121 = vld [vmem:[#allocation8 + $0x28] sm:$0xff]
    %v122 = vld [vmem:[#allocation8 + $0x30] sm:$0xff]
    %v123 = vld [vmem:[#allocation8 + $0x38] sm:$0xff]
    %v124 = vld [vmem:[%s0] sm:$0xff]
    %v125 = vld [vmem:[%s0 + $0x8] sm:$0xff]
    %v126 = vlaneseq
    %v127 = vand.u32 %v126, 127
    %128 = vset.pattern.permute.xlu0 0
    %129 = vperm.xlu0 %128, %v124
    %v130 = vpop.permute.xlu0 %129
    %131 = vset.pattern.permute.xlu0 0
    %132 = vperm.xlu0 %131, %v125
    %v133 = vpop.permute.xlu0 %132
    %vm134 = vcmp.eq.s32.totalorder %v127, %v130
    %vm135 = vcmp.eq.s32.totalorder %v127, %v133
    %v136 = vsel %vm134, 1, 0
    %v137 = vsel %vm135, 1, 0
    %v138 = vcvt.s32.f32 %v136
    %v139 = vcvt.s32.f32 %v137
    %vm140 = vcmask 523264
    %v142 = vsel %vm140, %v138, 0
    %v145 = vsel %vm140, %v139, 0
    %147 = vmatprep.subr.mxu0 0.0
    %148 = vmatpush1.msra.mxu0 0.0
    %149 = vmatprep.subr.mxu0 0.0
    %150 = vmatpush1.msra.mxu0 0.0
    %151 = vmatprep.subr.mxu0 0.0
    %152 = vmatpush1.msra.mxu0 0.0
    %153 = vmatprep.subr.mxu0 0.0
    %154 = vmatpush1.msra.mxu0 0.0
    %155 = vmatprep.subr.mxu0 0.0
    %156 = vmatpush1.msra.mxu0 0.0
    %157 = vmatprep.subr.mxu0 0.0
    %158 = vmatpush1.msra.mxu0 0.0
    %159 = vmatprep.subr.mxu0 0.0
    %160 = vmatpush1.msra.mxu0 0.0
    %161 = vmatprep.subr.mxu0 0.0
    %162 = vmatpush1.msra.mxu0 0.0
    %163 = vmatprep.subr.mxu0 0.0
    %164 = vmatpush1.msra.mxu0 %v123
    %165 = vmatprep.subr.mxu0 0.0
    %166 = vmatpush1.msra.mxu0 %v122
    %167 = vmatprep.subr.mxu0 0.0
    %168 = vmatpush1.msra.mxu0 %v121
    %169 = vmatprep.subr.mxu0 0.0
    %170 = vmatpush1.msra.mxu0 %v120
    %171 = vmatprep.subr.mxu0 0.0
    %172 = vmatpush1.msra.mxu0 %v119
    %173 = vmatprep.subr.mxu0 0.0
    %174 = vmatpush1.msra.mxu0 %v118
    %175 = vmatprep.subr.mxu0 0.0
    %176 = vmatpush1.msra.mxu0 %v117
    %177 = vmatprep.subr.mxu0 0.0
    %178 = vmatpush1.msra.mxu0 %v116
    %179 = vmatprep.subr.mxu0 0.0
    %180 = vmatpush2.msra.mxu0 0.0
    %181 = vmatprep.subr.mxu0 0.0
    %182 = vmatpush2.msra.mxu0 0.0
    %183 = vmatprep.subr.mxu0 0.0
    %184 = vmatpush2.msra.mxu0 0.0
    %185 = vmatprep.subr.mxu0 0.0
    %186 = vmatpush2.msra.mxu0 0.0
    %187 = vmatprep.subr.mxu0 0.0
    %188 = vmatpush2.msra.mxu0 0.0
    %189 = vmatprep.subr.mxu0 0.0
    %190 = vmatpush2.msra.mxu0 0.0
    %191 = vmatprep.subr.mxu0 0.0
    %192 = vmatpush2.msra.mxu0 0.0
    %193 = vmatprep.subr.mxu0 0.0
    %194 = vmatpush2.msra.mxu0 0.0
    %195 = vmatprep.subr.mxu0 0.0
    %196 = vmatpush2.msra.mxu0 0.0
    %197 = vmatprep.subr.mxu0 0.0
    %198 = vmatpush2.msra.mxu0 0.0
    %199 = vmatprep.subr.mxu0 0.0
    %200 = vmatpush2.msra.mxu0 0.0
    %201 = vmatprep.subr.mxu0 0.0
    %202 = vmatpush2.msra.mxu0 0.0
    %203 = vmatprep.subr.mxu0 0.0
    %204 = vmatpush2.msra.mxu0 0.0
    %205 = vmatprep.subr.mxu0 0.0
    %206 = vmatpush2.msra.mxu0 0.0
    %207 = vmatprep.subr.mxu0 0.0
    %208 = vmatpush2.msra.mxu0 0.0
    %209 = vmatprep.subr.mxu0 0.0
    %210 = vmatpush2.msra.mxu0 0.0
    %211 = vmatprep.mubr.f32.mxu0 0.0
    %212 = vmatmul.mubr.f32.gmra.mxu0 %v142
    %v213 = vpop.f32.mrf.mxu0
    %v214 = vadd.f32 0.0, %v213
    %v215 = vpop.f32.mrf.mxu0
    %216 = vmatprep.mubr.f32.mxu0 0.0
    %217 = vmatmul.mubr.f32.gmra.mxu0 %v145
    %v218 = vpop.f32.mrf.mxu0
    %v219 = vadd.f32 0.0, %v218
    %v220 = vpop.f32.mrf.mxu0
    %221 = vdwg.mxu0
    %v222 = vmul.f32 %v214, %v214
    %v223 = vmul.f32 %v219, %v219
    %vm224 = vcmask 261120
    %v225 = vsel %vm224, %v222, 0.0
    %226 = vadd.xlane.f32.xlu0 %v225
    %v227 = vpop.xlane.xlu0 %226
    %v228 = vsel %vm224, %v223, 0.0
    %229 = vadd.xlane.f32.xlu0 %v228
    %v230 = vpop.xlane.xlu0 %229
    %v231 = vrcp.pop 32.0
    %v232 = vmul.f32 %v227, %v231
    %v233 = vmul.f32 %v230, %v231
    %v234 = vadd.f32 %v232, 1e-05
    %v235 = vadd.f32 %v233, 1e-05
    %v236 = vrsqrt.pop %v234
    %v237 = vrsqrt.pop %v235
    %v238 = vmul.f32 %v214, %v236
    %v239 = vmul.f32 %v219, %v237
    %v240 = vlaneseq
    %v241 = vshrl.u32 %v240, 7
    %v242 = vsub.s32 0, %v241
    %v243 = vrot.slane %v95, %v242
    %v244 = vmul.f32 %v243, %v238
    %v245 = vmul.f32 %v243, %v239
    %v247 = vsel %vm224, %v244, 0
    %v250 = vsel %vm224, %v245, 0
    %252 = vmatprep.subr.mxu0 0.0
    %253 = vmatpush1.msra.mxu0 0.0
    %254 = vmatprep.subr.mxu0 0.0
    %255 = vmatpush1.msra.mxu0 0.0
    %256 = vmatprep.subr.mxu0 0.0
    %257 = vmatpush1.msra.mxu0 0.0
    %258 = vmatprep.subr.mxu0 0.0
    %259 = vmatpush1.msra.mxu0 0.0
    %260 = vmatprep.subr.mxu0 0.0
    %261 = vmatpush1.msra.mxu0 0.0
    %262 = vmatprep.subr.mxu0 0.0
    %263 = vmatpush1.msra.mxu0 0.0
    %264 = vmatprep.subr.mxu0 0.0
    %265 = vmatpush1.msra.mxu0 0.0
    %266 = vmatprep.subr.mxu0 0.0
    %267 = vmatpush1.msra.mxu0 0.0
    %268 = vmatprep.subr.mxu0 0.0
    %269 = vmatpush1.msra.mxu0 0.0
    %270 = vmatprep.subr.mxu0 0.0
    %271 = vmatpush1.msra.mxu0 0.0
    %272 = vmatprep.subr.mxu0 0.0
    %273 = vmatpush1.msra.mxu0 0.0
    %274 = vmatprep.subr.mxu0 0.0
    %275 = vmatpush1.msra.mxu0 0.0
    %276 = vmatprep.subr.mxu0 0.0
    %277 = vmatpush1.msra.mxu0 %v111
    %278 = vmatprep.subr.mxu0 0.0
    %279 = vmatpush1.msra.mxu0 %v106
    %280 = vmatprep.subr.mxu0 0.0
    %281 = vmatpush1.msra.mxu0 %v101
    %282 = vmatprep.subr.mxu0 0.0
    %283 = vmatpush1.msra.mxu0 %v96
    %284 = vmatprep.subr.mxu0 0.0
    %285 = vmatpush2.msra.mxu0 0.0
    %286 = vmatprep.subr.mxu0 0.0
    %287 = vmatpush2.msra.mxu0 0.0
    %288 = vmatprep.subr.mxu0 0.0
    %289 = vmatpush2.msra.mxu0 0.0
    %290 = vmatprep.subr.mxu0 0.0
    %291 = vmatpush2.msra.mxu0 0.0
    %292 = vmatprep.subr.mxu0 0.0
    %293 = vmatpush2.msra.mxu0 0.0
    %294 = vmatprep.subr.mxu0 0.0
    %295 = vmatpush2.msra.mxu0 0.0
    %296 = vmatprep.subr.mxu0 0.0
    %297 = vmatpush2.msra.mxu0 0.0
    %298 = vmatprep.subr.mxu0 0.0
    %299 = vmatpush2.msra.mxu0 0.0
    %300 = vmatprep.subr.mxu0 0.0
    %301 = vmatpush2.msra.mxu0 0.0
    %302 = vmatprep.subr.mxu0 0.0
    %303 = vmatpush2.msra.mxu0 0.0
    %304 = vmatprep.subr.mxu0 0.0
    %305 = vmatpush2.msra.mxu0 0.0
    %306 = vmatprep.subr.mxu0 0.0
    %307 = vmatpush2.msra.mxu0 0.0
    %308 = vmatprep.subr.mxu0 0.0
    %309 = vmatpush2.msra.mxu0 0.0
    %310 = vmatprep.subr.mxu0 0.0
    %311 = vmatpush2.msra.mxu0 0.0
    %312 = vmatprep.subr.mxu0 0.0
    %313 = vmatpush2.msra.mxu0 0.0
    %314 = vmatprep.subr.mxu0 0.0
    %315 = vmatpush2.msra.mxu0 0.0
    %316 = vmatprep.mubr.f32.mxu0 0.0
    %317 = vmatmul.mubr.f32.gmra.mxu0 %v247
    %v318 = vpop.f32.mrf.mxu0
    %v319 = vadd.f32 0.0, %v318
    %v320 = vpop.f32.mrf.mxu0
    %321 = vmatprep.mubr.f32.mxu0 0.0
    %322 = vmatmul.mubr.f32.gmra.mxu0 %v250
    %v323 = vpop.f32.mrf.mxu0
    %v324 = vadd.f32 0.0, %v323
    %v325 = vpop.f32.mrf.mxu0
    %326 = vdwg.mxu0
    %v327 = vmul.f32 %v319, %v93
    %v328 = vmul.f32 %v324, %v94
    %331 = vrot.lane.b32.xlu0 %v327, 96
    %v332 = vpop.permute.xlu0 %331
    %333 = vrot.lane.b32.xlu0 %v328, 96
    %v334 = vpop.permute.xlu0 %333
    %v337 = vadd.f32 %v327, %v332
    %v338 = vadd.f32 %v328, %v334
    %339 = vrot.lane.b32.xlu0 %v327, 112
    %v340 = vpop.permute.xlu0 %339
    %341 = vrot.lane.b32.xlu0 %v328, 112
    %v342 = vpop.permute.xlu0 %341
    %v345 = vadd.f32 %v327, %v340
    %v346 = vadd.f32 %v328, %v342
    %349 = vrot.lane.b32.xlu0 %v337, 124
    %v350 = vpop.permute.xlu0 %349
    %351 = vrot.lane.b32.xlu0 %v338, 124
    %v352 = vpop.permute.xlu0 %351
    %353 = vrot.lane.b32.xlu0 %v337, 120
    %v354 = vpop.permute.xlu0 %353
    %355 = vrot.lane.b32.xlu0 %v338, 120
    %v356 = vpop.permute.xlu0 %355
    %357 = vrot.lane.b32.xlu0 %v337, 116
    %v358 = vpop.permute.xlu0 %357
    %359 = vrot.lane.b32.xlu0 %v338, 116
    %v360 = vpop.permute.xlu0 %359
    %361 = vrot.lane.b32.xlu0 %v337, 112
    %v362 = vpop.permute.xlu0 %361
    %363 = vrot.lane.b32.xlu0 %v338, 112
    %v364 = vpop.permute.xlu0 %363
    %365 = vrot.lane.b32.xlu0 %v337, 108
    %v366 = vpop.permute.xlu0 %365
    %367 = vrot.lane.b32.xlu0 %v338, 108
    %v368 = vpop.permute.xlu0 %367
    %369 = vrot.lane.b32.xlu0 %v337, 104
    %v370 = vpop.permute.xlu0 %369
    %371 = vrot.lane.b32.xlu0 %v338, 104
    %v372 = vpop.permute.xlu0 %371
    %373 = vrot.lane.b32.xlu0 %v337, 100
    %v374 = vpop.permute.xlu0 %373
    %375 = vrot.lane.b32.xlu0 %v338, 100
    %v376 = vpop.permute.xlu0 %375
    %379 = vrot.lane.b32.xlu0 %v345, 124
    %v380 = vpop.permute.xlu0 %379
    %381 = vrot.lane.b32.xlu0 %v346, 124
    %v382 = vpop.permute.xlu0 %381
    %383 = vrot.lane.b32.xlu0 %v345, 120
    %v384 = vpop.permute.xlu0 %383
    %385 = vrot.lane.b32.xlu0 %v346, 120
    %v386 = vpop.permute.xlu0 %385
    %387 = vrot.lane.b32.xlu0 %v345, 116
    %v388 = vpop.permute.xlu0 %387
    %389 = vrot.lane.b32.xlu0 %v346, 116
    %v390 = vpop.permute.xlu0 %389
    %393 = vrot.lane.b32.xlu0 %v319, 124
    %v394 = vpop.permute.xlu0 %393
    %395 = vrot.lane.b32.xlu0 %v324, 124
    %v396 = vpop.permute.xlu0 %395
    %397 = vrot.lane.b32.xlu0 %v319, 120
    %v398 = vpop.permute.xlu0 %397
    %399 = vrot.lane.b32.xlu0 %v324, 120
    %v400 = vpop.permute.xlu0 %399
    %401 = vrot.lane.b32.xlu0 %v319, 116
    %v402 = vpop.permute.xlu0 %401
    %403 = vrot.lane.b32.xlu0 %v324, 116
    %v404 = vpop.permute.xlu0 %403
    %405 = vrot.lane.b32.xlu0 %v345, 64
    %v406 = vpop.permute.xlu0 %405
    %407 = vrot.lane.b32.xlu0 %v346, 64
    %v408 = vpop.permute.xlu0 %407
    %409 = vrot.lane.b32.xlu0 %v380, 64
    %v410 = vpop.permute.xlu0 %409
    %411 = vrot.lane.b32.xlu0 %v382, 64
    %v412 = vpop.permute.xlu0 %411
    %413 = vrot.lane.b32.xlu0 %v384, 64
    %v414 = vpop.permute.xlu0 %413
    %415 = vrot.lane.b32.xlu0 %v386, 64
    %v416 = vpop.permute.xlu0 %415
    %417 = vrot.lane.b32.xlu0 %v388, 64
    %v418 = vpop.permute.xlu0 %417
    %419 = vrot.lane.b32.xlu0 %v390, 64
    %v420 = vpop.permute.xlu0 %419
    %vm421 = vcmask 31744
    %v422 = vsel %vm421, %v337, 0
    %v424 = vsel %vm421, %v338, 0
    %v426 = vsel %vm421, %v350, 0
    %v428 = vsel %vm421, %v352, 0
    %v430 = vsel %vm421, %v354, 0
    %v432 = vsel %vm421, %v356, 0
    %v434 = vsel %vm421, %v358, 0
    %v436 = vsel %vm421, %v360, 0
    %v438 = vsel %vm421, %v362, 0
    %v440 = vsel %vm421, %v364, 0
    %v442 = vsel %vm421, %v366, 0
    %v444 = vsel %vm421, %v368, 0
    %v446 = vsel %vm421, %v370, 0
    %v448 = vsel %vm421, %v372, 0
    %v450 = vsel %vm421, %v374, 0
    %v452 = vsel %vm421, %v376, 0
    %v454 = vsel %vm421, %v406, 0
    %v456 = vsel %vm421, %v408, 0
    %v458 = vsel %vm421, %v410, 0
    %v460 = vsel %vm421, %v412, 0
    %v462 = vsel %vm421, %v414, 0
    %v464 = vsel %vm421, %v416, 0
    %v466 = vsel %vm421, %v418, 0
    %v468 = vsel %vm421, %v420, 0
    %470 = vmatprep.subr.mxu0 0.0
    %471 = vmatpush1.xpose.msra.mxu0 %v468
    %472 = vmatprep.subr.mxu0 0.0
    %473 = vmatpush1.xpose.msra.mxu0 %v466
    %474 = vmatprep.subr.mxu0 0.0
    %475 = vmatpush1.xpose.msra.mxu0 %v468
    %476 = vmatprep.subr.mxu0 0.0
    %477 = vmatpush1.xpose.msra.mxu0 %v466
    %478 = vmatprep.subr.mxu0 0.0
    %479 = vmatpush1.xpose.msra.mxu0 %v464
    %480 = vmatprep.subr.mxu0 0.0
    %481 = vmatpush1.xpose.msra.mxu0 %v462
    %482 = vmatprep.subr.mxu0 0.0
    %483 = vmatpush1.xpose.msra.mxu0 %v464
    %484 = vmatprep.subr.mxu0 0.0
    %485 = vmatpush1.xpose.msra.mxu0 %v462
    %486 = vmatprep.subr.mxu0 0.0
    %487 = vmatpush1.xpose.msra.mxu0 %v460
    %488 = vmatprep.subr.mxu0 0.0
    %489 = vmatpush1.xpose.msra.mxu0 %v458
    %490 = vmatprep.subr.mxu0 0.0
    %491 = vmatpush1.xpose.msra.mxu0 %v460
    %492 = vmatprep.subr.mxu0 0.0
    %493 = vmatpush1.xpose.msra.mxu0 %v458
    %494 = vmatprep.subr.mxu0 0.0
    %495 = vmatpush1.xpose.msra.mxu0 %v456
    %496 = vmatprep.subr.mxu0 0.0
    %497 = vmatpush1.xpose.msra.mxu0 %v454
    %498 = vmatprep.subr.mxu0 0.0
    %499 = vmatpush1.xpose.msra.mxu0 %v456
    %500 = vmatprep.subr.mxu0 0.0
    %501 = vmatpush1.xpose.msra.mxu0 %v454
    %502 = vmatprep.subr.mxu0 0.0
    %503 = vmatpush2.xpose.msra.mxu0 0.0
    %504 = vmatprep.subr.mxu0 0.0
    %505 = vmatpush2.xpose.msra.mxu0 0.0
    %506 = vmatprep.subr.mxu0 0.0
    %507 = vmatpush2.xpose.msra.mxu0 0.0
    %508 = vmatprep.subr.mxu0 0.0
    %509 = vmatpush2.xpose.msra.mxu0 0.0
    %510 = vmatprep.subr.mxu0 0.0
    %511 = vmatpush2.xpose.msra.mxu0 0.0
    %512 = vmatprep.subr.mxu0 0.0
    %513 = vmatpush2.xpose.msra.mxu0 0.0
    %514 = vmatprep.subr.mxu0 0.0
    %515 = vmatpush2.xpose.msra.mxu0 0.0
    %516 = vmatprep.subr.mxu0 0.0
    %517 = vmatpush2.xpose.msra.mxu0 0.0
    %518 = vmatprep.subr.mxu0 0.0
    %519 = vmatpush2.xpose.msra.mxu0 0.0
    %520 = vmatprep.subr.mxu0 0.0
    %521 = vmatpush2.xpose.msra.mxu0 0.0
    %522 = vmatprep.subr.mxu0 0.0
    %523 = vmatpush2.xpose.msra.mxu0 0.0
    %524 = vmatprep.subr.mxu0 0.0
    %525 = vmatpush2.xpose.msra.mxu0 0.0
    %526 = vmatprep.subr.mxu0 0.0
    %527 = vmatpush2.xpose.msra.mxu0 0.0
    %528 = vmatprep.subr.mxu0 0.0
    %529 = vmatpush2.xpose.msra.mxu0 0.0
    %530 = vmatprep.subr.mxu0 0.0
    %531 = vmatpush2.xpose.msra.mxu0 0.0
    %532 = vmatprep.subr.mxu0 0.0
    %533 = vmatpush2.xpose.msra.mxu0 0.0
    %534 = vmatprep.mubr.f32.mxu0 0.0
    %535 = vmatmul.mubr.f32.gmra.mxu0 %v422
    %v536 = vpop.f32.mrf.mxu0
    %v537 = vadd.f32 %v77, %v536
    %v538 = vpop.f32.mrf.mxu0
    %539 = vmatprep.mubr.f32.mxu0 0.0
    %540 = vmatmul.mubr.f32.gmra.mxu0 %v424
    %v541 = vpop.f32.mrf.mxu0
    %v542 = vadd.f32 %v78, %v541
    %v543 = vpop.f32.mrf.mxu0
    %544 = vmatprep.mubr.f32.mxu0 0.0
    %545 = vmatmul.mubr.f32.gmra.mxu0 %v426
    %v546 = vpop.f32.mrf.mxu0
    %v547 = vadd.f32 %v79, %v546
    %v548 = vpop.f32.mrf.mxu0
    %549 = vmatprep.mubr.f32.mxu0 0.0
    %550 = vmatmul.mubr.f32.gmra.mxu0 %v428
    %v551 = vpop.f32.mrf.mxu0
    %v552 = vadd.f32 %v80, %v551
    %v553 = vpop.f32.mrf.mxu0
    %554 = vmatprep.mubr.f32.mxu0 0.0
    %555 = vmatmul.mubr.f32.gmra.mxu0 %v430
    %v556 = vpop.f32.mrf.mxu0
    %v557 = vadd.f32 %v81, %v556
    %v558 = vpop.f32.mrf.mxu0
    %559 = vmatprep.mubr.f32.mxu0 0.0
    %560 = vmatmul.mubr.f32.gmra.mxu0 %v432
    %v561 = vpop.f32.mrf.mxu0
    %v562 = vadd.f32 %v82, %v561
    %v563 = vpop.f32.mrf.mxu0
    %564 = vmatprep.mubr.f32.mxu0 0.0
    %565 = vmatmul.mubr.f32.gmra.mxu0 %v434
    %v566 = vpop.f32.mrf.mxu0
    %v567 = vadd.f32 %v83, %v566
    %v568 = vpop.f32.mrf.mxu0
    %569 = vmatprep.mubr.f32.mxu0 0.0
    %570 = vmatmul.mubr.f32.gmra.mxu0 %v436
    %v571 = vpop.f32.mrf.mxu0
    %v572 = vadd.f32 %v84, %v571
    %v573 = vpop.f32.mrf.mxu0
    %574 = vmatprep.mubr.f32.mxu0 0.0
    %575 = vmatmul.mubr.f32.gmra.mxu0 %v438
    %v576 = vpop.f32.mrf.mxu0
    %v577 = vadd.f32 %v85, %v576
    %v578 = vpop.f32.mrf.mxu0
    %579 = vmatprep.mubr.f32.mxu0 0.0
    %580 = vmatmul.mubr.f32.gmra.mxu0 %v440
    %v581 = vpop.f32.mrf.mxu0
    %v582 = vadd.f32 %v86, %v581
    %v583 = vpop.f32.mrf.mxu0
    %584 = vmatprep.mubr.f32.mxu0 0.0
    %585 = vmatmul.mubr.f32.gmra.mxu0 %v442
    %v586 = vpop.f32.mrf.mxu0
    %v587 = vadd.f32 %v87, %v586
    %v588 = vpop.f32.mrf.mxu0
    %589 = vmatprep.mubr.f32.mxu0 0.0
    %590 = vmatmul.mubr.f32.gmra.mxu0 %v444
    %v591 = vpop.f32.mrf.mxu0
    %v592 = vadd.f32 %v88, %v591
    %v593 = vpop.f32.mrf.mxu0
    %594 = vmatprep.mubr.f32.mxu0 0.0
    %595 = vmatmul.mubr.f32.gmra.mxu0 %v446
    %v596 = vpop.f32.mrf.mxu0
    %v597 = vadd.f32 %v89, %v596
    %v598 = vpop.f32.mrf.mxu0
    %599 = vmatprep.mubr.f32.mxu0 0.0
    %600 = vmatmul.mubr.f32.gmra.mxu0 %v448
    %v601 = vpop.f32.mrf.mxu0
    %v602 = vadd.f32 %v90, %v601
    %v603 = vpop.f32.mrf.mxu0
    %604 = vmatprep.mubr.f32.mxu0 0.0
    %605 = vmatmul.mubr.f32.gmra.mxu0 %v450
    %v606 = vpop.f32.mrf.mxu0
    %v607 = vadd.f32 %v91, %v606
    %v608 = vpop.f32.mrf.mxu0
    %609 = vmatprep.mubr.f32.mxu0 0.0
    %610 = vmatmul.mubr.f32.gmra.mxu0 %v452
    %v611 = vpop.f32.mrf.mxu0
    %v612 = vadd.f32 %v92, %v611
    %v613 = vpop.f32.mrf.mxu0
    %614 = vdwg.mxu0
    %615 = vmax.xlane.f32.xlu0 %v537
    %v616 = vpop.xlane.xlu0 %615
    %617 = vmax.xlane.f32.xlu0 %v542
    %v618 = vpop.xlane.xlu0 %617
    %619 = vmax.xlane.f32.xlu0 %v547
    %v620 = vpop.xlane.xlu0 %619
    %621 = vmax.xlane.f32.xlu0 %v552
    %v622 = vpop.xlane.xlu0 %621
    %623 = vmax.xlane.f32.xlu0 %v557
    %v624 = vpop.xlane.xlu0 %623
    %625 = vmax.xlane.f32.xlu0 %v562
    %v626 = vpop.xlane.xlu0 %625
    %627 = vmax.xlane.f32.xlu0 %v567
    %v628 = vpop.xlane.xlu0 %627
    %629 = vmax.xlane.f32.xlu0 %v572
    %v630 = vpop.xlane.xlu0 %629
    %631 = vmax.xlane.f32.xlu0 %v577
    %v632 = vpop.xlane.xlu0 %631
    %633 = vmax.xlane.f32.xlu0 %v582
    %v634 = vpop.xlane.xlu0 %633
    %635 = vmax.xlane.f32.xlu0 %v587
    %v636 = vpop.xlane.xlu0 %635
    %637 = vmax.xlane.f32.xlu0 %v592
    %v638 = vpop.xlane.xlu0 %637
    %639 = vmax.xlane.f32.xlu0 %v597
    %v640 = vpop.xlane.xlu0 %639
    %641 = vmax.xlane.f32.xlu0 %v602
    %v642 = vpop.xlane.xlu0 %641
    %643 = vmax.xlane.f32.xlu0 %v607
    %v644 = vpop.xlane.xlu0 %643
    %645 = vmax.xlane.f32.xlu0 %v612
    %v646 = vpop.xlane.xlu0 %645
    %v647 = vsub.f32 %v537, %v616
    %v648 = vsub.f32 %v542, %v618
    %v649 = vsub.f32 %v547, %v620
    %v650 = vsub.f32 %v552, %v622
    %v651 = vsub.f32 %v557, %v624
    %v652 = vsub.f32 %v562, %v626
    %v653 = vsub.f32 %v567, %v628
    %v654 = vsub.f32 %v572, %v630
    %v655 = vsub.f32 %v577, %v632
    %v656 = vsub.f32 %v582, %v634
    %v657 = vsub.f32 %v587, %v636
    %v658 = vsub.f32 %v592, %v638
    %v659 = vsub.f32 %v597, %v640
    %v660 = vsub.f32 %v602, %v642
    %v661 = vsub.f32 %v607, %v644
    %v662 = vsub.f32 %v612, %v646
    %v663 = vmul.f32 %v647, 1.442695
    %v664 = vpow.pop %v663
    %v665 = vmul.f32 %v648, 1.442695
    %v666 = vpow.pop %v665
    %v667 = vmul.f32 %v649, 1.442695
    %v668 = vpow.pop %v667
    %v669 = vmul.f32 %v650, 1.442695
    %v670 = vpow.pop %v669
    %v671 = vmul.f32 %v651, 1.442695
    %v672 = vpow.pop %v671
    %v673 = vmul.f32 %v652, 1.442695
    %v674 = vpow.pop %v673
    %v675 = vmul.f32 %v653, 1.442695
    %v676 = vpow.pop %v675
    %v677 = vmul.f32 %v654, 1.442695
    %v678 = vpow.pop %v677
    %v679 = vmul.f32 %v655, 1.442695
    %v680 = vpow.pop %v679
    %v681 = vmul.f32 %v656, 1.442695
    %v682 = vpow.pop %v681
    %v683 = vmul.f32 %v657, 1.442695
    %v684 = vpow.pop %v683
    %v685 = vmul.f32 %v658, 1.442695
    %v686 = vpow.pop %v685
    %v687 = vmul.f32 %v659, 1.442695
    %v688 = vpow.pop %v687
    %v689 = vmul.f32 %v660, 1.442695
    %v690 = vpow.pop %v689
    %v691 = vmul.f32 %v661, 1.442695
    %v692 = vpow.pop %v691
    %v693 = vmul.f32 %v662, 1.442695
    %v694 = vpow.pop %v693
    %695 = vadd.xlane.f32.xlu0 %v664
    %v696 = vpop.xlane.xlu0 %695
    %697 = vadd.xlane.f32.xlu0 %v666
    %v698 = vpop.xlane.xlu0 %697
    %699 = vadd.xlane.f32.xlu0 %v668
    %v700 = vpop.xlane.xlu0 %699
    %701 = vadd.xlane.f32.xlu0 %v670
    %v702 = vpop.xlane.xlu0 %701
    %703 = vadd.xlane.f32.xlu0 %v672
    %v704 = vpop.xlane.xlu0 %703
    %705 = vadd.xlane.f32.xlu0 %v674
    %v706 = vpop.xlane.xlu0 %705
    %707 = vadd.xlane.f32.xlu0 %v676
    %v708 = vpop.xlane.xlu0 %707
    %709 = vadd.xlane.f32.xlu0 %v678
    %v710 = vpop.xlane.xlu0 %709
    %711 = vadd.xlane.f32.xlu0 %v680
    %v712 = vpop.xlane.xlu0 %711
    %713 = vadd.xlane.f32.xlu0 %v682
    %v714 = vpop.xlane.xlu0 %713
    %715 = vadd.xlane.f32.xlu0 %v684
    %v716 = vpop.xlane.xlu0 %715
    %717 = vadd.xlane.f32.xlu0 %v686
    %v718 = vpop.xlane.xlu0 %717
    %719 = vadd.xlane.f32.xlu0 %v688
    %v720 = vpop.xlane.xlu0 %719
    %721 = vadd.xlane.f32.xlu0 %v690
    %v722 = vpop.xlane.xlu0 %721
    %723 = vadd.xlane.f32.xlu0 %v692
    %v724 = vpop.xlane.xlu0 %723
    %725 = vadd.xlane.f32.xlu0 %v694
    %v726 = vpop.xlane.xlu0 %725
    %v727 = vrcp.pop %v696
    %v728 = vrcp.pop %v698
    %v729 = vrcp.pop %v700
    %v730 = vrcp.pop %v702
    %v731 = vrcp.pop %v704
    %v732 = vrcp.pop %v706
    %v733 = vrcp.pop %v708
    %v734 = vrcp.pop %v710
    %v735 = vrcp.pop %v712
    %v736 = vrcp.pop %v714
    %v737 = vrcp.pop %v716
    %v738 = vrcp.pop %v718
    %v739 = vrcp.pop %v720
    %v740 = vrcp.pop %v722
    %v741 = vrcp.pop %v724
    %v742 = vrcp.pop %v726
    %v743 = vmul.f32 %v664, %v727
    %v744 = vmul.f32 %v666, %v728
    %v745 = vmul.f32 %v668, %v729
    %v746 = vmul.f32 %v670, %v730
    %v747 = vmul.f32 %v672, %v731
    %v748 = vmul.f32 %v674, %v732
    %v749 = vmul.f32 %v676, %v733
    %v750 = vmul.f32 %v678, %v734
    %v751 = vmul.f32 %v680, %v735
    %v752 = vmul.f32 %v682, %v736
    %v753 = vmul.f32 %v684, %v737
    %v754 = vmul.f32 %v686, %v738
    %v755 = vmul.f32 %v688, %v739
    %v756 = vmul.f32 %v690, %v740
    %v757 = vmul.f32 %v692, %v741
    %v758 = vmul.f32 %v694, %v742
    %759 = vrot.lane.b32.xlu0 %v319, 32
    %v760 = vpop.permute.xlu0 %759
    %761 = vrot.lane.b32.xlu0 %v324, 32
    %v762 = vpop.permute.xlu0 %761
    %763 = vrot.lane.b32.xlu0 %v394, 32
    %v764 = vpop.permute.xlu0 %763
    %765 = vrot.lane.b32.xlu0 %v396, 32
    %v766 = vpop.permute.xlu0 %765
    %767 = vrot.lane.b32.xlu0 %v398, 32
    %v768 = vpop.permute.xlu0 %767
    %769 = vrot.lane.b32.xlu0 %v400, 32
    %v770 = vpop.permute.xlu0 %769
    %771 = vrot.lane.b32.xlu0 %v402, 32
    %v772 = vpop.permute.xlu0 %771
    %773 = vrot.lane.b32.xlu0 %v404, 32
    %v774 = vpop.permute.xlu0 %773
    %783 = vmatprep.subr.mxu0 0.0
    %784 = vmatpush1.msra.mxu0 %v774
    %785 = vmatprep.subr.mxu0 0.0
    %786 = vmatpush1.msra.mxu0 %v772
    %787 = vmatprep.subr.mxu0 0.0
    %788 = vmatpush1.msra.mxu0 %v774
    %789 = vmatprep.subr.mxu0 0.0
    %790 = vmatpush1.msra.mxu0 %v772
    %791 = vmatprep.subr.mxu0 0.0
    %792 = vmatpush1.msra.mxu0 %v770
    %793 = vmatprep.subr.mxu0 0.0
    %794 = vmatpush1.msra.mxu0 %v768
    %795 = vmatprep.subr.mxu0 0.0
    %796 = vmatpush1.msra.mxu0 %v770
    %797 = vmatprep.subr.mxu0 0.0
    %798 = vmatpush1.msra.mxu0 %v768
    %799 = vmatprep.subr.mxu0 0.0
    %800 = vmatpush1.msra.mxu0 %v766
    %801 = vmatprep.subr.mxu0 0.0
    %802 = vmatpush1.msra.mxu0 %v764
    %803 = vmatprep.subr.mxu0 0.0
    %804 = vmatpush1.msra.mxu0 %v766
    %805 = vmatprep.subr.mxu0 0.0
    %806 = vmatpush1.msra.mxu0 %v764
    %807 = vmatprep.subr.mxu0 0.0
    %808 = vmatpush1.msra.mxu0 %v762
    %809 = vmatprep.subr.mxu0 0.0
    %810 = vmatpush1.msra.mxu0 %v760
    %811 = vmatprep.subr.mxu0 0.0
    %812 = vmatpush1.msra.mxu0 %v762
    %813 = vmatprep.subr.mxu0 0.0
    %814 = vmatpush1.msra.mxu0 %v760
    %815 = vmatprep.subr.mxu0 0.0
    %816 = vmatpush2.msra.mxu0 0.0
    %817 = vmatprep.subr.mxu0 0.0
    %818 = vmatpush2.msra.mxu0 0.0
    %819 = vmatprep.subr.mxu0 0.0
    %820 = vmatpush2.msra.mxu0 0.0
    %821 = vmatprep.subr.mxu0 0.0
    %822 = vmatpush2.msra.mxu0 0.0
    %823 = vmatprep.subr.mxu0 0.0
    %824 = vmatpush2.msra.mxu0 0.0
    %825 = vmatprep.subr.mxu0 0.0
    %826 = vmatpush2.msra.mxu0 0.0
    %827 = vmatprep.subr.mxu0 0.0
    %828 = vmatpush2.msra.mxu0 0.0
    %829 = vmatprep.subr.mxu0 0.0
    %830 = vmatpush2.msra.mxu0 0.0
    %831 = vmatprep.subr.mxu0 0.0
    %832 = vmatpush2.msra.mxu0 0.0
    %833 = vmatprep.subr.mxu0 0.0
    %834 = vmatpush2.msra.mxu0 0.0
    %835 = vmatprep.subr.mxu0 0.0
    %836 = vmatpush2.msra.mxu0 0.0
    %837 = vmatprep.subr.mxu0 0.0
    %838 = vmatpush2.msra.mxu0 0.0
    %839 = vmatprep.subr.mxu0 0.0
    %840 = vmatpush2.msra.mxu0 0.0
    %841 = vmatprep.subr.mxu0 0.0
    %842 = vmatpush2.msra.mxu0 0.0
    %843 = vmatprep.subr.mxu0 0.0
    %844 = vmatpush2.msra.mxu0 0.0
    %845 = vmatprep.subr.mxu0 0.0
    %846 = vmatpush2.msra.mxu0 0.0
    %847 = vmatprep.mubr.f32.mxu0 0.0
    %848 = vmatmul.mubr.f32.gmra.mxu0 %v743
    %v849 = vpop.f32.mrf.mxu0
    %v850 = vadd.f32 0.0, %v849
    %v851 = vpop.f32.mrf.mxu0
    %852 = vmatprep.mubr.f32.mxu0 0.0
    %853 = vmatmul.mubr.f32.gmra.mxu0 %v744
    %v854 = vpop.f32.mrf.mxu0
    %v855 = vadd.f32 0.0, %v854
    %v856 = vpop.f32.mrf.mxu0
    %857 = vmatprep.mubr.f32.mxu0 0.0
    %858 = vmatmul.mubr.f32.gmra.mxu0 %v745
    %v859 = vpop.f32.mrf.mxu0
    %v860 = vadd.f32 0.0, %v859
    %v861 = vpop.f32.mrf.mxu0
    %862 = vmatprep.mubr.f32.mxu0 0.0
    %863 = vmatmul.mubr.f32.gmra.mxu0 %v746
    %v864 = vpop.f32.mrf.mxu0
    %v865 = vadd.f32 0.0, %v864
    %v866 = vpop.f32.mrf.mxu0
    %867 = vmatprep.mubr.f32.mxu0 0.0
    %868 = vmatmul.mubr.f32.gmra.mxu0 %v747
    %v869 = vpop.f32.mrf.mxu0
    %v870 = vadd.f32 0.0, %v869
    %v871 = vpop.f32.mrf.mxu0
    %872 = vmatprep.mubr.f32.mxu0 0.0
    %873 = vmatmul.mubr.f32.gmra.mxu0 %v748
    %v874 = vpop.f32.mrf.mxu0
    %v875 = vadd.f32 0.0, %v874
    %v876 = vpop.f32.mrf.mxu0
    %877 = vmatprep.mubr.f32.mxu0 0.0
    %878 = vmatmul.mubr.f32.gmra.mxu0 %v749
    %v879 = vpop.f32.mrf.mxu0
    %v880 = vadd.f32 0.0, %v879
    %v881 = vpop.f32.mrf.mxu0
    %882 = vmatprep.mubr.f32.mxu0 0.0
    %883 = vmatmul.mubr.f32.gmra.mxu0 %v750
    %v884 = vpop.f32.mrf.mxu0
    %v885 = vadd.f32 0.0, %v884
    %v886 = vpop.f32.mrf.mxu0
    %887 = vmatprep.mubr.f32.mxu0 0.0
    %888 = vmatmul.mubr.f32.gmra.mxu0 %v751
    %v889 = vpop.f32.mrf.mxu0
    %v890 = vadd.f32 0.0, %v889
    %v891 = vpop.f32.mrf.mxu0
    %892 = vmatprep.mubr.f32.mxu0 0.0
    %893 = vmatmul.mubr.f32.gmra.mxu0 %v752
    %v894 = vpop.f32.mrf.mxu0
    %v895 = vadd.f32 0.0, %v894
    %v896 = vpop.f32.mrf.mxu0
    %897 = vmatprep.mubr.f32.mxu0 0.0
    %898 = vmatmul.mubr.f32.gmra.mxu0 %v753
    %v899 = vpop.f32.mrf.mxu0
    %v900 = vadd.f32 0.0, %v899
    %v901 = vpop.f32.mrf.mxu0
    %902 = vmatprep.mubr.f32.mxu0 0.0
    %903 = vmatmul.mubr.f32.gmra.mxu0 %v754
    %v904 = vpop.f32.mrf.mxu0
    %v905 = vadd.f32 0.0, %v904
    %v906 = vpop.f32.mrf.mxu0
    %907 = vmatprep.mubr.f32.mxu0 0.0
    %908 = vmatmul.mubr.f32.gmra.mxu0 %v755
    %v909 = vpop.f32.mrf.mxu0
    %v910 = vadd.f32 0.0, %v909
    %v911 = vpop.f32.mrf.mxu0
    %912 = vmatprep.mubr.f32.mxu0 0.0
    %913 = vmatmul.mubr.f32.gmra.mxu0 %v756
    %v914 = vpop.f32.mrf.mxu0
    %v915 = vadd.f32 0.0, %v914
    %v916 = vpop.f32.mrf.mxu0
    %917 = vmatprep.mubr.f32.mxu0 0.0
    %918 = vmatmul.mubr.f32.gmra.mxu0 %v757
    %v919 = vpop.f32.mrf.mxu0
    %v920 = vadd.f32 0.0, %v919
    %v921 = vpop.f32.mrf.mxu0
    %922 = vmatprep.mubr.f32.mxu0 0.0
    %923 = vmatmul.mubr.f32.gmra.mxu0 %v758
    %v924 = vpop.f32.mrf.mxu0
    %v925 = vadd.f32 0.0, %v924
    %v926 = vpop.f32.mrf.mxu0
    %927 = vdwg.mxu0
    %930 = vrot.lane.b32.xlu0 %v860, 4
    %v931 = vpop.permute.xlu0 %930
    %932 = vrot.lane.b32.xlu0 %v865, 4
    %v933 = vpop.permute.xlu0 %932
    %938 = vrot.lane.b32.xlu0 %v870, 8
    %v939 = vpop.permute.xlu0 %938
    %940 = vrot.lane.b32.xlu0 %v875, 8
    %v941 = vpop.permute.xlu0 %940
    %946 = vrot.lane.b32.xlu0 %v880, 12
    %v947 = vpop.permute.xlu0 %946
    %948 = vrot.lane.b32.xlu0 %v885, 12
    %v949 = vpop.permute.xlu0 %948
    %954 = vrot.lane.b32.xlu0 %v890, 16
    %v955 = vpop.permute.xlu0 %954
    %956 = vrot.lane.b32.xlu0 %v895, 16
    %v957 = vpop.permute.xlu0 %956
    %962 = vrot.lane.b32.xlu0 %v900, 20
    %v963 = vpop.permute.xlu0 %962
    %964 = vrot.lane.b32.xlu0 %v905, 20
    %v965 = vpop.permute.xlu0 %964
    %970 = vrot.lane.b32.xlu0 %v910, 24
    %v971 = vpop.permute.xlu0 %970
    %972 = vrot.lane.b32.xlu0 %v915, 24
    %v973 = vpop.permute.xlu0 %972
    %978 = vrot.lane.b32.xlu0 %v920, 28
    %v979 = vpop.permute.xlu0 %978
    %980 = vrot.lane.b32.xlu0 %v925, 28
    %v981 = vpop.permute.xlu0 %980
    %v984 = vsel %vm421, %v850, %v931
    %v985 = vsel %vm421, %v855, %v933
    %vm986 = vcmask 64512
    %v987 = vsel %vm986, %v984, %v939
    %v988 = vsel %vm986, %v985, %v941
    %vm989 = vcmask 97280
    %v990 = vsel %vm989, %v987, %v947
    %v991 = vsel %vm989, %v988, %v949
    %vm992 = vcmask 130048
    %v993 = vsel %vm992, %v990, %v955
    %v994 = vsel %vm992, %v991, %v957
    %vm995 = vcmask 162816
    %v996 = vsel %vm995, %v993, %v963
    %v997 = vsel %vm995, %v994, %v965
    %vm998 = vcmask 195584
    %v999 = vsel %vm998, %v996, %v971
    %v1000 = vsel %vm998, %v997, %v973
    %vm1001 = vcmask 228352
    %v1002 = vsel %vm1001, %v999, %v979
    %v1003 = vsel %vm1001, %v1000, %v981
    %1012 = vrot.lane.b32.xlu0 %v96, 16
    %v1013 = vpop.permute.xlu0 %1012
    %1014 = vrot.lane.b32.xlu0 %v97, 16
    %v1015 = vpop.permute.xlu0 %1014
    %1016 = vrot.lane.b32.xlu0 %v101, 16
    %v1017 = vpop.permute.xlu0 %1016
    %1018 = vrot.lane.b32.xlu0 %v102, 16
    %v1019 = vpop.permute.xlu0 %1018
    %1020 = vrot.lane.b32.xlu0 %v106, 16
    %v1021 = vpop.permute.xlu0 %1020
    %1022 = vrot.lane.b32.xlu0 %v107, 16
    %v1023 = vpop.permute.xlu0 %1022
    %1024 = vrot.lane.b32.xlu0 %v111, 16
    %v1025 = vpop.permute.xlu0 %1024
    %1026 = vrot.lane.b32.xlu0 %v112, 16
    %v1027 = vpop.permute.xlu0 %1026
    %v1028 = vsel %vm992, %v1013, %v1015
    %v1029 = vsel %vm992, %v1017, %v1019
    %v1030 = vsel %vm992, %v1021, %v1023
    %v1031 = vsel %vm992, %v1025, %v1027
    %v1037 = vsel %vm224, %v1002, 0
    %v1040 = vsel %vm224, %v1003, 0
    %1042 = vmatprep.subr.mxu0 0.0
    %1043 = vmatpush1.msra.mxu0 0.0
    %1044 = vmatprep.subr.mxu0 0.0
    %1045 = vmatpush1.msra.mxu0 0.0
    %1046 = vmatprep.subr.mxu0 0.0
    %1047 = vmatpush1.msra.mxu0 0.0
    %1048 = vmatprep.subr.mxu0 0.0
    %1049 = vmatpush1.msra.mxu0 0.0
    %1050 = vmatprep.subr.mxu0 0.0
    %1051 = vmatpush1.msra.mxu0 0.0
    %1052 = vmatprep.subr.mxu0 0.0
    %1053 = vmatpush1.msra.mxu0 0.0
    %1054 = vmatprep.subr.mxu0 0.0
    %1055 = vmatpush1.msra.mxu0 0.0
    %1056 = vmatprep.subr.mxu0 0.0
    %1057 = vmatpush1.msra.mxu0 0.0
    %1058 = vmatprep.subr.mxu0 0.0
    %1059 = vmatpush1.msra.mxu0 0.0
    %1060 = vmatprep.subr.mxu0 0.0
    %1061 = vmatpush1.msra.mxu0 0.0
    %1062 = vmatprep.subr.mxu0 0.0
    %1063 = vmatpush1.msra.mxu0 0.0
    %1064 = vmatprep.subr.mxu0 0.0
    %1065 = vmatpush1.msra.mxu0 0.0
    %1066 = vmatprep.subr.mxu0 0.0
    %1067 = vmatpush1.msra.mxu0 %v1031
    %1068 = vmatprep.subr.mxu0 0.0
    %1069 = vmatpush1.msra.mxu0 %v1030
    %1070 = vmatprep.subr.mxu0 0.0
    %1071 = vmatpush1.msra.mxu0 %v1029
    %1072 = vmatprep.subr.mxu0 0.0
    %1073 = vmatpush1.msra.mxu0 %v1028
    %1074 = vmatprep.subr.mxu0 0.0
    %1075 = vmatpush2.msra.mxu0 0.0
    %1076 = vmatprep.subr.mxu0 0.0
    %1077 = vmatpush2.msra.mxu0 0.0
    %1078 = vmatprep.subr.mxu0 0.0
    %1079 = vmatpush2.msra.mxu0 0.0
    %1080 = vmatprep.subr.mxu0 0.0
    %1081 = vmatpush2.msra.mxu0 0.0
    %1082 = vmatprep.subr.mxu0 0.0
    %1083 = vmatpush2.msra.mxu0 0.0
    %1084 = vmatprep.subr.mxu0 0.0
    %1085 = vmatpush2.msra.mxu0 0.0
    %1086 = vmatprep.subr.mxu0 0.0
    %1087 = vmatpush2.msra.mxu0 0.0
    %1088 = vmatprep.subr.mxu0 0.0
    %1089 = vmatpush2.msra.mxu0 0.0
    %1090 = vmatprep.subr.mxu0 0.0
    %1091 = vmatpush2.msra.mxu0 0.0
    %1092 = vmatprep.subr.mxu0 0.0
    %1093 = vmatpush2.msra.mxu0 0.0
    %1094 = vmatprep.subr.mxu0 0.0
    %1095 = vmatpush2.msra.mxu0 0.0
    %1096 = vmatprep.subr.mxu0 0.0
    %1097 = vmatpush2.msra.mxu0 0.0
    %1098 = vmatprep.subr.mxu0 0.0
    %1099 = vmatpush2.msra.mxu0 0.0
    %1100 = vmatprep.subr.mxu0 0.0
    %1101 = vmatpush2.msra.mxu0 0.0
    %1102 = vmatprep.subr.mxu0 0.0
    %1103 = vmatpush2.msra.mxu0 0.0
    %1104 = vmatprep.subr.mxu0 0.0
    %1105 = vmatpush2.msra.mxu0 0.0
    %1106 = vmatprep.mubr.f32.mxu0 0.0
    %1107 = vmatmul.mubr.f32.gmra.mxu0 %v1037
    %v1108 = vpop.f32.mrf.mxu0
    %v1109 = vadd.f32 0.0, %v1108
    %v1110 = vpop.f32.mrf.mxu0
    %1111 = vmatprep.mubr.f32.mxu0 0.0
    %1112 = vmatmul.mubr.f32.gmra.mxu0 %v1040
    %v1113 = vpop.f32.mrf.mxu0
    %v1114 = vadd.f32 0.0, %v1113
    %v1115 = vpop.f32.mrf.mxu0
    %1116 = vdwg.mxu0
    %v1117 = vadd.f32 %v214, %v1109
    %v1118 = vadd.f32 %v219, %v1114
    %v1119 = vmul.f32 %v1117, %v1117
    %v1120 = vmul.f32 %v1118, %v1118
    %v1121 = vsel %vm224, %v1119, 0.0
    %1122 = vadd.xlane.f32.xlu0 %v1121
    %v1123 = vpop.xlane.xlu0 %1122
    %v1124 = vsel %vm224, %v1120, 0.0
    %1125 = vadd.xlane.f32.xlu0 %v1124
    %v1126 = vpop.xlane.xlu0 %1125
    %v1127 = vmul.f32 %v1123, %v231
    %v1128 = vmul.f32 %v1126, %v231
    %v1129 = vadd.f32 %v1127, 1e-05
    %v1130 = vadd.f32 %v1128, 1e-05
    %v1131 = vrsqrt.pop %v1129
    %v1132 = vrsqrt.pop %v1130
    %v1133 = vmul.f32 %v1117, %v1131
    %v1134 = vmul.f32 %v1118, %v1132
    %v1135 = vlaneseq
    %v1136 = vshrl.u32 %v1135, 7
    %v1137 = vsub.s32 1, %v1136
    %v1138 = vrot.slane %v95, %v1137
    %v1139 = vmul.f32 %v1138, %v1133
    %v1140 = vmul.f32 %v1138, %v1134
    %1145 = vrot.lane.b32.xlu0 %v97, 112
    %v1146 = vpop.permute.xlu0 %1145
    %1147 = vrot.lane.b32.xlu0 %v98, 112
    %v1148 = vpop.permute.xlu0 %1147
    %1149 = vrot.lane.b32.xlu0 %v102, 112
    %v1150 = vpop.permute.xlu0 %1149
    %1151 = vrot.lane.b32.xlu0 %v103, 112
    %v1152 = vpop.permute.xlu0 %1151
    %1153 = vrot.lane.b32.xlu0 %v107, 112
    %v1154 = vpop.permute.xlu0 %1153
    %1155 = vrot.lane.b32.xlu0 %v108, 112
    %v1156 = vpop.permute.xlu0 %1155
    %1157 = vrot.lane.b32.xlu0 %v112, 112
    %v1158 = vpop.permute.xlu0 %1157
    %1159 = vrot.lane.b32.xlu0 %v113, 112
    %v1160 = vpop.permute.xlu0 %1159
    %vm1161 = vcmask 916480
    %v1162 = vsel %vm1161, %v1146, %v1148
    %v1163 = vsel %vm1161, %v1150, %v1152
    %v1164 = vsel %vm1161, %v1154, %v1156
    %v1165 = vsel %vm1161, %v1158, %v1160
    %v1171 = vsel %vm224, %v1139, 0
    %v1174 = vsel %vm224, %v1140, 0
    %1176 = vmatprep.subr.mxu0 0.0
    %1177 = vmatpush1.msra.mxu0 0.0
    %1178 = vmatprep.subr.mxu0 0.0
    %1179 = vmatpush1.msra.mxu0 0.0
    %1180 = vmatprep.subr.mxu0 0.0
    %1181 = vmatpush1.msra.mxu0 0.0
    %1182 = vmatprep.subr.mxu0 0.0
    %1183 = vmatpush1.msra.mxu0 0.0
    %1184 = vmatprep.subr.mxu0 0.0
    %1185 = vmatpush1.msra.mxu0 0.0
    %1186 = vmatprep.subr.mxu0 0.0
    %1187 = vmatpush1.msra.mxu0 0.0
    %1188 = vmatprep.subr.mxu0 0.0
    %1189 = vmatpush1.msra.mxu0 0.0
    %1190 = vmatprep.subr.mxu0 0.0
    %1191 = vmatpush1.msra.mxu0 0.0
    %1192 = vmatprep.subr.mxu0 0.0
    %1193 = vmatpush1.msra.mxu0 0.0
    %1194 = vmatprep.subr.mxu0 0.0
    %1195 = vmatpush1.msra.mxu0 0.0
    %1196 = vmatprep.subr.mxu0 0.0
    %1197 = vmatpush1.msra.mxu0 0.0
    %1198 = vmatprep.subr.mxu0 0.0
    %1199 = vmatpush1.msra.mxu0 0.0
    %1200 = vmatprep.subr.mxu0 0.0
    %1201 = vmatpush1.msra.mxu0 %v1165
    %1202 = vmatprep.subr.mxu0 0.0
    %1203 = vmatpush1.msra.mxu0 %v1164
    %1204 = vmatprep.subr.mxu0 0.0
    %1205 = vmatpush1.msra.mxu0 %v1163
    %1206 = vmatprep.subr.mxu0 0.0
    %1207 = vmatpush1.msra.mxu0 %v1162
    %1208 = vmatprep.subr.mxu0 0.0
    %1209 = vmatpush2.msra.mxu0 0.0
    %1210 = vmatprep.subr.mxu0 0.0
    %1211 = vmatpush2.msra.mxu0 0.0
    %1212 = vmatprep.subr.mxu0 0.0
    %1213 = vmatpush2.msra.mxu0 0.0
    %1214 = vmatprep.subr.mxu0 0.0
    %1215 = vmatpush2.msra.mxu0 0.0
    %1216 = vmatprep.subr.mxu0 0.0
    %1217 = vmatpush2.msra.mxu0 0.0
    %1218 = vmatprep.subr.mxu0 0.0
    %1219 = vmatpush2.msra.mxu0 0.0
    %1220 = vmatprep.subr.mxu0 0.0
    %1221 = vmatpush2.msra.mxu0 0.0
    %1222 = vmatprep.subr.mxu0 0.0
    %1223 = vmatpush2.msra.mxu0 0.0
    %1224 = vmatprep.subr.mxu0 0.0
    %1225 = vmatpush2.msra.mxu0 0.0
    %1226 = vmatprep.subr.mxu0 0.0
    %1227 = vmatpush2.msra.mxu0 0.0
    %1228 = vmatprep.subr.mxu0 0.0
    %1229 = vmatpush2.msra.mxu0 0.0
    %1230 = vmatprep.subr.mxu0 0.0
    %1231 = vmatpush2.msra.mxu0 0.0
    %1232 = vmatprep.subr.mxu0 0.0
    %1233 = vmatpush2.msra.mxu0 0.0
    %1234 = vmatprep.subr.mxu0 0.0
    %1235 = vmatpush2.msra.mxu0 0.0
    %1236 = vmatprep.subr.mxu0 0.0
    %1237 = vmatpush2.msra.mxu0 0.0
    %1238 = vmatprep.subr.mxu0 0.0
    %1239 = vmatpush2.msra.mxu0 0.0
    %1240 = vmatprep.mubr.f32.mxu0 0.0
    %1241 = vmatmul.mubr.f32.gmra.mxu0 %v1171
    %v1242 = vpop.f32.mrf.mxu0
    %v1243 = vadd.f32 0.0, %v1242
    %v1244 = vpop.f32.mrf.mxu0
    %1245 = vmatprep.mubr.f32.mxu0 0.0
    %1246 = vmatmul.mubr.f32.gmra.mxu0 %v1174
    %v1247 = vpop.f32.mrf.mxu0
    %v1248 = vadd.f32 0.0, %v1247
    %v1249 = vpop.f32.mrf.mxu0
    %1250 = vdwg.mxu0
    %v1251 = vxor.u32 %v1243, 2147483648
    %v1252 = vxor.u32 %v1248, 2147483648
    %v1253 = vmul.f32 %v1251, 1.442695
    %v1254 = vpow.pop %v1253
    %v1255 = vmul.f32 %v1252, 1.442695
    %v1256 = vpow.pop %v1255
    %v1257 = vadd.f32 %v1254, 1.0
    %v1258 = vadd.f32 %v1256, 1.0
    %v1259 = vrcp.pop %v1257
    %v1260 = vmul.f32 1.0, %v1259
    %v1261 = vrcp.pop %v1258
    %v1262 = vmul.f32 1.0, %v1261
    %v1263 = vmul.f32 %v1243, %v1260
    %v1264 = vmul.f32 %v1248, %v1262
    %1267 = vrot.lane.b32.xlu0 %v1243, 64
    %v1268 = vpop.permute.xlu0 %1267
    %1269 = vrot.lane.b32.xlu0 %v1248, 64
    %v1270 = vpop.permute.xlu0 %1269
    %v1273 = vmul.f32 %v1263, %v1268
    %v1274 = vmul.f32 %v1264, %v1270
    %1283 = vrot.lane.b32.xlu0 %v116, 96
    %v1284 = vpop.permute.xlu0 %1283
    %1285 = vrot.lane.b32.xlu0 %v117, 96
    %v1286 = vpop.permute.xlu0 %1285
    %1287 = vrot.lane.b32.xlu0 %v118, 96
    %v1288 = vpop.permute.xlu0 %1287
    %1289 = vrot.lane.b32.xlu0 %v119, 96
    %v1290 = vpop.permute.xlu0 %1289
    %1291 = vrot.lane.b32.xlu0 %v120, 96
    %v1292 = vpop.permute.xlu0 %1291
    %1293 = vrot.lane.b32.xlu0 %v121, 96
    %v1294 = vpop.permute.xlu0 %1293
    %1295 = vrot.lane.b32.xlu0 %v122, 96
    %v1296 = vpop.permute.xlu0 %1295
    %1297 = vrot.lane.b32.xlu0 %v123, 96
    %v1298 = vpop.permute.xlu0 %1297
    %v1308 = vsel %vm140, %v1273, 0
    %v1311 = vsel %vm140, %v1274, 0
    %1313 = vmatprep.subr.mxu0 0.0
    %1314 = vmatpush1.msra.mxu0 0.0
    %1315 = vmatprep.subr.mxu0 0.0
    %1316 = vmatpush1.msra.mxu0 0.0
    %1317 = vmatprep.subr.mxu0 0.0
    %1318 = vmatpush1.msra.mxu0 0.0
    %1319 = vmatprep.subr.mxu0 0.0
    %1320 = vmatpush1.msra.mxu0 0.0
    %1321 = vmatprep.subr.mxu0 0.0
    %1322 = vmatpush1.msra.mxu0 0.0
    %1323 = vmatprep.subr.mxu0 0.0
    %1324 = vmatpush1.msra.mxu0 0.0
    %1325 = vmatprep.subr.mxu0 0.0
    %1326 = vmatpush1.msra.mxu0 0.0
    %1327 = vmatprep.subr.mxu0 0.0
    %1328 = vmatpush1.msra.mxu0 0.0
    %1329 = vmatprep.subr.mxu0 0.0
    %1330 = vmatpush1.msra.mxu0 %v1298
    %1331 = vmatprep.subr.mxu0 0.0
    %1332 = vmatpush1.msra.mxu0 %v1296
    %1333 = vmatprep.subr.mxu0 0.0
    %1334 = vmatpush1.msra.mxu0 %v1294
    %1335 = vmatprep.subr.mxu0 0.0
    %1336 = vmatpush1.msra.mxu0 %v1292
    %1337 = vmatprep.subr.mxu0 0.0
    %1338 = vmatpush1.msra.mxu0 %v1290
    %1339 = vmatprep.subr.mxu0 0.0
    %1340 = vmatpush1.msra.mxu0 %v1288
    %1341 = vmatprep.subr.mxu0 0.0
    %1342 = vmatpush1.msra.mxu0 %v1286
    %1343 = vmatprep.subr.mxu0 0.0
    %1344 = vmatpush1.msra.mxu0 %v1284
    %1345 = vmatprep.subr.mxu0 0.0
    %1346 = vmatpush2.msra.mxu0 0.0
    %1347 = vmatprep.subr.mxu0 0.0
    %1348 = vmatpush2.msra.mxu0 0.0
    %1349 = vmatprep.subr.mxu0 0.0
    %1350 = vmatpush2.msra.mxu0 0.0
    %1351 = vmatprep.subr.mxu0 0.0
    %1352 = vmatpush2.msra.mxu0 0.0
    %1353 = vmatprep.subr.mxu0 0.0
    %1354 = vmatpush2.msra.mxu0 0.0
    %1355 = vmatprep.subr.mxu0 0.0
    %1356 = vmatpush2.msra.mxu0 0.0
    %1357 = vmatprep.subr.mxu0 0.0
    %1358 = vmatpush2.msra.mxu0 0.0
    %1359 = vmatprep.subr.mxu0 0.0
    %1360 = vmatpush2.msra.mxu0 0.0
    %1361 = vmatprep.subr.mxu0 0.0
    %1362 = vmatpush2.msra.mxu0 0.0
    %1363 = vmatprep.subr.mxu0 0.0
    %1364 = vmatpush2.msra.mxu0 0.0
    %1365 = vmatprep.subr.mxu0 0.0
    %1366 = vmatpush2.msra.mxu0 0.0
    %1367 = vmatprep.subr.mxu0 0.0
    %1368 = vmatpush2.msra.mxu0 0.0
    %1369 = vmatprep.subr.mxu0 0.0
    %1370 = vmatpush2.msra.mxu0 0.0
    %1371 = vmatprep.subr.mxu0 0.0
    %1372 = vmatpush2.msra.mxu0 0.0
    %1373 = vmatprep.subr.mxu0 0.0
    %1374 = vmatpush2.msra.mxu0 0.0
    %1375 = vmatprep.subr.mxu0 0.0
    %1376 = vmatpush2.msra.mxu0 0.0
    %1377 = vmatprep.mubr.f32.mxu0 0.0
    %1378 = vmatmul.mubr.f32.gmra.mxu0 %v1308
    %v1379 = vpop.f32.mrf.mxu0
    %v1380 = vadd.f32 0.0, %v1379
    %v1381 = vpop.f32.mrf.mxu0
    %1382 = vmatprep.mubr.f32.mxu0 0.0
    %1383 = vmatmul.mubr.f32.gmra.mxu0 %v1311
    %v1384 = vpop.f32.mrf.mxu0
    %v1385 = vadd.f32 0.0, %v1384
    %v1386 = vpop.f32.mrf.mxu0
    %1387 = vdwg.mxu0
    %v1388 = vadd.f32 %v1117, %v1380
    %v1389 = vadd.f32 %v1118, %v1385
    %v1390 = vmul.f32 %v1388, %v1388
    %v1391 = vmul.f32 %v1389, %v1389
    %v1392 = vsel %vm224, %v1390, 0.0
    %1393 = vadd.xlane.f32.xlu0 %v1392
    %v1394 = vpop.xlane.xlu0 %1393
    %v1395 = vsel %vm224, %v1391, 0.0
    %1396 = vadd.xlane.f32.xlu0 %v1395
    %v1397 = vpop.xlane.xlu0 %1396
    %v1398 = vmul.f32 %v1394, %v231
    %v1399 = vmul.f32 %v1397, %v231
    %v1400 = vadd.f32 %v1398, 1e-05
    %v1401 = vadd.f32 %v1399, 1e-05
    %v1402 = vrsqrt.pop %v1400
    %v1403 = vrsqrt.pop %v1401
    %v1404 = vmul.f32 %v1388, %v1402
    %v1405 = vmul.f32 %v1389, %v1403
    %v1406 = vlaneseq
    %v1407 = vshrl.u32 %v1406, 7
    %v1408 = vsub.s32 2, %v1407
    %v1409 = vrot.slane %v95, %v1408
    %v1410 = vmul.f32 %v1409, %v1404
    %v1411 = vmul.f32 %v1409, %v1405
    %v1417 = vsel %vm224, %v1410, 0
    %v1420 = vsel %vm224, %v1411, 0
    %1422 = vmatprep.subr.mxu0 0.0
    %1423 = vmatpush1.msra.mxu0 0.0
    %1424 = vmatprep.subr.mxu0 0.0
    %1425 = vmatpush1.msra.mxu0 0.0
    %1426 = vmatprep.subr.mxu0 0.0
    %1427 = vmatpush1.msra.mxu0 0.0
    %1428 = vmatprep.subr.mxu0 0.0
    %1429 = vmatpush1.msra.mxu0 0.0
    %1430 = vmatprep.subr.mxu0 0.0
    %1431 = vmatpush1.msra.mxu0 0.0
    %1432 = vmatprep.subr.mxu0 0.0
    %1433 = vmatpush1.msra.mxu0 0.0
    %1434 = vmatprep.subr.mxu0 0.0
    %1435 = vmatpush1.msra.mxu0 0.0
    %1436 = vmatprep.subr.mxu0 0.0
    %1437 = vmatpush1.msra.mxu0 0.0
    %1438 = vmatprep.subr.mxu0 0.0
    %1439 = vmatpush1.msra.mxu0 0.0
    %1440 = vmatprep.subr.mxu0 0.0
    %1441 = vmatpush1.msra.mxu0 0.0
    %1442 = vmatprep.subr.mxu0 0.0
    %1443 = vmatpush1.msra.mxu0 0.0
    %1444 = vmatprep.subr.mxu0 0.0
    %1445 = vmatpush1.msra.mxu0 0.0
    %1446 = vmatprep.subr.mxu0 0.0
    %1447 = vmatpush1.msra.mxu0 %v1160
    %1448 = vmatprep.subr.mxu0 0.0
    %1449 = vmatpush1.msra.mxu0 %v1156
    %1450 = vmatprep.subr.mxu0 0.0
    %1451 = vmatpush1.msra.mxu0 %v1152
    %1452 = vmatprep.subr.mxu0 0.0
    %1453 = vmatpush1.msra.mxu0 %v1148
    %1454 = vmatprep.subr.mxu0 0.0
    %1455 = vmatpush2.msra.mxu0 0.0
    %1456 = vmatprep.subr.mxu0 0.0
    %1457 = vmatpush2.msra.mxu0 0.0
    %1458 = vmatprep.subr.mxu0 0.0
    %1459 = vmatpush2.msra.mxu0 0.0
    %1460 = vmatprep.subr.mxu0 0.0
    %1461 = vmatpush2.msra.mxu0 0.0
    %1462 = vmatprep.subr.mxu0 0.0
    %1463 = vmatpush2.msra.mxu0 0.0
    %1464 = vmatprep.subr.mxu0 0.0
    %1465 = vmatpush2.msra.mxu0 0.0
    %1466 = vmatprep.subr.mxu0 0.0
    %1467 = vmatpush2.msra.mxu0 0.0
    %1468 = vmatprep.subr.mxu0 0.0
    %1469 = vmatpush2.msra.mxu0 0.0
    %1470 = vmatprep.subr.mxu0 0.0
    %1471 = vmatpush2.msra.mxu0 0.0
    %1472 = vmatprep.subr.mxu0 0.0
    %1473 = vmatpush2.msra.mxu0 0.0
    %1474 = vmatprep.subr.mxu0 0.0
    %1475 = vmatpush2.msra.mxu0 0.0
    %1476 = vmatprep.subr.mxu0 0.0
    %1477 = vmatpush2.msra.mxu0 0.0
    %1478 = vmatprep.subr.mxu0 0.0
    %1479 = vmatpush2.msra.mxu0 0.0
    %1480 = vmatprep.subr.mxu0 0.0
    %1481 = vmatpush2.msra.mxu0 0.0
    %1482 = vmatprep.subr.mxu0 0.0
    %1483 = vmatpush2.msra.mxu0 0.0
    %1484 = vmatprep.subr.mxu0 0.0
    %1485 = vmatpush2.msra.mxu0 0.0
    %1486 = vmatprep.mubr.f32.mxu0 0.0
    %1487 = vmatmul.mubr.f32.gmra.mxu0 %v1417
    %v1488 = vpop.f32.mrf.mxu0
    %v1489 = vadd.f32 0.0, %v1488
    %v1490 = vpop.f32.mrf.mxu0
    %1491 = vmatprep.mubr.f32.mxu0 0.0
    %1492 = vmatmul.mubr.f32.gmra.mxu0 %v1420
    %v1493 = vpop.f32.mrf.mxu0
    %v1494 = vadd.f32 0.0, %v1493
    %v1495 = vpop.f32.mrf.mxu0
    %1496 = vdwg.mxu0
    %v1497 = vmul.f32 %v1489, %v93
    %v1498 = vmul.f32 %v1494, %v94
    %1501 = vrot.lane.b32.xlu0 %v1497, 96
    %v1502 = vpop.permute.xlu0 %1501
    %1503 = vrot.lane.b32.xlu0 %v1498, 96
    %v1504 = vpop.permute.xlu0 %1503
    %v1507 = vadd.f32 %v1497, %v1502
    %v1508 = vadd.f32 %v1498, %v1504
    %1509 = vrot.lane.b32.xlu0 %v1497, 112
    %v1510 = vpop.permute.xlu0 %1509
    %1511 = vrot.lane.b32.xlu0 %v1498, 112
    %v1512 = vpop.permute.xlu0 %1511
    %v1515 = vadd.f32 %v1497, %v1510
    %v1516 = vadd.f32 %v1498, %v1512
    %1519 = vrot.lane.b32.xlu0 %v1507, 124
    %v1520 = vpop.permute.xlu0 %1519
    %1521 = vrot.lane.b32.xlu0 %v1508, 124
    %v1522 = vpop.permute.xlu0 %1521
    %1523 = vrot.lane.b32.xlu0 %v1507, 120
    %v1524 = vpop.permute.xlu0 %1523
    %1525 = vrot.lane.b32.xlu0 %v1508, 120
    %v1526 = vpop.permute.xlu0 %1525
    %1527 = vrot.lane.b32.xlu0 %v1507, 116
    %v1528 = vpop.permute.xlu0 %1527
    %1529 = vrot.lane.b32.xlu0 %v1508, 116
    %v1530 = vpop.permute.xlu0 %1529
    %1531 = vrot.lane.b32.xlu0 %v1507, 112
    %v1532 = vpop.permute.xlu0 %1531
    %1533 = vrot.lane.b32.xlu0 %v1508, 112
    %v1534 = vpop.permute.xlu0 %1533
    %1535 = vrot.lane.b32.xlu0 %v1507, 108
    %v1536 = vpop.permute.xlu0 %1535
    %1537 = vrot.lane.b32.xlu0 %v1508, 108
    %v1538 = vpop.permute.xlu0 %1537
    %1539 = vrot.lane.b32.xlu0 %v1507, 104
    %v1540 = vpop.permute.xlu0 %1539
    %1541 = vrot.lane.b32.xlu0 %v1508, 104
    %v1542 = vpop.permute.xlu0 %1541
    %1543 = vrot.lane.b32.xlu0 %v1507, 100
    %v1544 = vpop.permute.xlu0 %1543
    %1545 = vrot.lane.b32.xlu0 %v1508, 100
    %v1546 = vpop.permute.xlu0 %1545
    %1549 = vrot.lane.b32.xlu0 %v1515, 124
    %v1550 = vpop.permute.xlu0 %1549
    %1551 = vrot.lane.b32.xlu0 %v1516, 124
    %v1552 = vpop.permute.xlu0 %1551
    %1553 = vrot.lane.b32.xlu0 %v1515, 120
    %v1554 = vpop.permute.xlu0 %1553
    %1555 = vrot.lane.b32.xlu0 %v1516, 120
    %v1556 = vpop.permute.xlu0 %1555
    %1557 = vrot.lane.b32.xlu0 %v1515, 116
    %v1558 = vpop.permute.xlu0 %1557
    %1559 = vrot.lane.b32.xlu0 %v1516, 116
    %v1560 = vpop.permute.xlu0 %1559
    %1563 = vrot.lane.b32.xlu0 %v1489, 124
    %v1564 = vpop.permute.xlu0 %1563
    %1565 = vrot.lane.b32.xlu0 %v1494, 124
    %v1566 = vpop.permute.xlu0 %1565
    %1567 = vrot.lane.b32.xlu0 %v1489, 120
    %v1568 = vpop.permute.xlu0 %1567
    %1569 = vrot.lane.b32.xlu0 %v1494, 120
    %v1570 = vpop.permute.xlu0 %1569
    %1571 = vrot.lane.b32.xlu0 %v1489, 116
    %v1572 = vpop.permute.xlu0 %1571
    %1573 = vrot.lane.b32.xlu0 %v1494, 116
    %v1574 = vpop.permute.xlu0 %1573
    %1575 = vrot.lane.b32.xlu0 %v1515, 64
    %v1576 = vpop.permute.xlu0 %1575
    %1577 = vrot.lane.b32.xlu0 %v1516, 64
    %v1578 = vpop.permute.xlu0 %1577
    %1579 = vrot.lane.b32.xlu0 %v1550, 64
    %v1580 = vpop.permute.xlu0 %1579
    %1581 = vrot.lane.b32.xlu0 %v1552, 64
    %v1582 = vpop.permute.xlu0 %1581
    %1583 = vrot.lane.b32.xlu0 %v1554, 64
    %v1584 = vpop.permute.xlu0 %1583
    %1585 = vrot.lane.b32.xlu0 %v1556, 64
    %v1586 = vpop.permute.xlu0 %1585
    %1587 = vrot.lane.b32.xlu0 %v1558, 64
    %v1588 = vpop.permute.xlu0 %1587
    %1589 = vrot.lane.b32.xlu0 %v1560, 64
    %v1590 = vpop.permute.xlu0 %1589
    %v1591 = vsel %vm421, %v1507, 0
    %v1593 = vsel %vm421, %v1508, 0
    %v1595 = vsel %vm421, %v1520, 0
    %v1597 = vsel %vm421, %v1522, 0
    %v1599 = vsel %vm421, %v1524, 0
    %v1601 = vsel %vm421, %v1526, 0
    %v1603 = vsel %vm421, %v1528, 0
    %v1605 = vsel %vm421, %v1530, 0
    %v1607 = vsel %vm421, %v1532, 0
    %v1609 = vsel %vm421, %v1534, 0
    %v1611 = vsel %vm421, %v1536, 0
    %v1613 = vsel %vm421, %v1538, 0
    %v1615 = vsel %vm421, %v1540, 0
    %v1617 = vsel %vm421, %v1542, 0
    %v1619 = vsel %vm421, %v1544, 0
    %v1621 = vsel %vm421, %v1546, 0
    %v1623 = vsel %vm421, %v1576, 0
    %v1625 = vsel %vm421, %v1578, 0
    %v1627 = vsel %vm421, %v1580, 0
    %v1629 = vsel %vm421, %v1582, 0
    %v1631 = vsel %vm421, %v1584, 0
    %v1633 = vsel %vm421, %v1586, 0
    %v1635 = vsel %vm421, %v1588, 0
    %v1637 = vsel %vm421, %v1590, 0
    %1639 = vmatprep.subr.mxu0 0.0
    %1640 = vmatpush1.xpose.msra.mxu0 %v1637
    %1641 = vmatprep.subr.mxu0 0.0
    %1642 = vmatpush1.xpose.msra.mxu0 %v1635
    %1643 = vmatprep.subr.mxu0 0.0
    %1644 = vmatpush1.xpose.msra.mxu0 %v1637
    %1645 = vmatprep.subr.mxu0 0.0
    %1646 = vmatpush1.xpose.msra.mxu0 %v1635
    %1647 = vmatprep.subr.mxu0 0.0
    %1648 = vmatpush1.xpose.msra.mxu0 %v1633
    %1649 = vmatprep.subr.mxu0 0.0
    %1650 = vmatpush1.xpose.msra.mxu0 %v1631
    %1651 = vmatprep.subr.mxu0 0.0
    %1652 = vmatpush1.xpose.msra.mxu0 %v1633
    %1653 = vmatprep.subr.mxu0 0.0
    %1654 = vmatpush1.xpose.msra.mxu0 %v1631
    %1655 = vmatprep.subr.mxu0 0.0
    %1656 = vmatpush1.xpose.msra.mxu0 %v1629
    %1657 = vmatprep.subr.mxu0 0.0
    %1658 = vmatpush1.xpose.msra.mxu0 %v1627
    %1659 = vmatprep.subr.mxu0 0.0
    %1660 = vmatpush1.xpose.msra.mxu0 %v1629
    %1661 = vmatprep.subr.mxu0 0.0
    %1662 = vmatpush1.xpose.msra.mxu0 %v1627
    %1663 = vmatprep.subr.mxu0 0.0
    %1664 = vmatpush1.xpose.msra.mxu0 %v1625
    %1665 = vmatprep.subr.mxu0 0.0
    %1666 = vmatpush1.xpose.msra.mxu0 %v1623
    %1667 = vmatprep.subr.mxu0 0.0
    %1668 = vmatpush1.xpose.msra.mxu0 %v1625
    %1669 = vmatprep.subr.mxu0 0.0
    %1670 = vmatpush1.xpose.msra.mxu0 %v1623
    %1671 = vmatprep.subr.mxu0 0.0
    %1672 = vmatpush2.xpose.msra.mxu0 0.0
    %1673 = vmatprep.subr.mxu0 0.0
    %1674 = vmatpush2.xpose.msra.mxu0 0.0
    %1675 = vmatprep.subr.mxu0 0.0
    %1676 = vmatpush2.xpose.msra.mxu0 0.0
    %1677 = vmatprep.subr.mxu0 0.0
    %1678 = vmatpush2.xpose.msra.mxu0 0.0
    %1679 = vmatprep.subr.mxu0 0.0
    %1680 = vmatpush2.xpose.msra.mxu0 0.0
    %1681 = vmatprep.subr.mxu0 0.0
    %1682 = vmatpush2.xpose.msra.mxu0 0.0
    %1683 = vmatprep.subr.mxu0 0.0
    %1684 = vmatpush2.xpose.msra.mxu0 0.0
    %1685 = vmatprep.subr.mxu0 0.0
    %1686 = vmatpush2.xpose.msra.mxu0 0.0
    %1687 = vmatprep.subr.mxu0 0.0
    %1688 = vmatpush2.xpose.msra.mxu0 0.0
    %1689 = vmatprep.subr.mxu0 0.0
    %1690 = vmatpush2.xpose.msra.mxu0 0.0
    %1691 = vmatprep.subr.mxu0 0.0
    %1692 = vmatpush2.xpose.msra.mxu0 0.0
    %1693 = vmatprep.subr.mxu0 0.0
    %1694 = vmatpush2.xpose.msra.mxu0 0.0
    %1695 = vmatprep.subr.mxu0 0.0
    %1696 = vmatpush2.xpose.msra.mxu0 0.0
    %1697 = vmatprep.subr.mxu0 0.0
    %1698 = vmatpush2.xpose.msra.mxu0 0.0
    %1699 = vmatprep.subr.mxu0 0.0
    %1700 = vmatpush2.xpose.msra.mxu0 0.0
    %1701 = vmatprep.subr.mxu0 0.0
    %1702 = vmatpush2.xpose.msra.mxu0 0.0
    %1703 = vmatprep.mubr.f32.mxu0 0.0
    %1704 = vmatmul.mubr.f32.gmra.mxu0 %v1591
    %v1705 = vpop.f32.mrf.mxu0
    %v1706 = vadd.f32 %v77, %v1705
    %v1707 = vpop.f32.mrf.mxu0
    %1708 = vmatprep.mubr.f32.mxu0 0.0
    %1709 = vmatmul.mubr.f32.gmra.mxu0 %v1593
    %v1710 = vpop.f32.mrf.mxu0
    %v1711 = vadd.f32 %v78, %v1710
    %v1712 = vpop.f32.mrf.mxu0
    %1713 = vmatprep.mubr.f32.mxu0 0.0
    %1714 = vmatmul.mubr.f32.gmra.mxu0 %v1595
    %v1715 = vpop.f32.mrf.mxu0
    %v1716 = vadd.f32 %v79, %v1715
    %v1717 = vpop.f32.mrf.mxu0
    %1718 = vmatprep.mubr.f32.mxu0 0.0
    %1719 = vmatmul.mubr.f32.gmra.mxu0 %v1597
    %v1720 = vpop.f32.mrf.mxu0
    %v1721 = vadd.f32 %v80, %v1720
    %v1722 = vpop.f32.mrf.mxu0
    %1723 = vmatprep.mubr.f32.mxu0 0.0
    %1724 = vmatmul.mubr.f32.gmra.mxu0 %v1599
    %v1725 = vpop.f32.mrf.mxu0
    %v1726 = vadd.f32 %v81, %v1725
    %v1727 = vpop.f32.mrf.mxu0
    %1728 = vmatprep.mubr.f32.mxu0 0.0
    %1729 = vmatmul.mubr.f32.gmra.mxu0 %v1601
    %v1730 = vpop.f32.mrf.mxu0
    %v1731 = vadd.f32 %v82, %v1730
    %v1732 = vpop.f32.mrf.mxu0
    %1733 = vmatprep.mubr.f32.mxu0 0.0
    %1734 = vmatmul.mubr.f32.gmra.mxu0 %v1603
    %v1735 = vpop.f32.mrf.mxu0
    %v1736 = vadd.f32 %v83, %v1735
    %v1737 = vpop.f32.mrf.mxu0
    %1738 = vmatprep.mubr.f32.mxu0 0.0
    %1739 = vmatmul.mubr.f32.gmra.mxu0 %v1605
    %v1740 = vpop.f32.mrf.mxu0
    %v1741 = vadd.f32 %v84, %v1740
    %v1742 = vpop.f32.mrf.mxu0
    %1743 = vmatprep.mubr.f32.mxu0 0.0
    %1744 = vmatmul.mubr.f32.gmra.mxu0 %v1607
    %v1745 = vpop.f32.mrf.mxu0
    %v1746 = vadd.f32 %v85, %v1745
    %v1747 = vpop.f32.mrf.mxu0
    %1748 = vmatprep.mubr.f32.mxu0 0.0
    %1749 = vmatmul.mubr.f32.gmra.mxu0 %v1609
    %v1750 = vpop.f32.mrf.mxu0
    %v1751 = vadd.f32 %v86, %v1750
    %v1752 = vpop.f32.mrf.mxu0
    %1753 = vmatprep.mubr.f32.mxu0 0.0
    %1754 = vmatmul.mubr.f32.gmra.mxu0 %v1611
    %v1755 = vpop.f32.mrf.mxu0
    %v1756 = vadd.f32 %v87, %v1755
    %v1757 = vpop.f32.mrf.mxu0
    %1758 = vmatprep.mubr.f32.mxu0 0.0
    %1759 = vmatmul.mubr.f32.gmra.mxu0 %v1613
    %v1760 = vpop.f32.mrf.mxu0
    %v1761 = vadd.f32 %v88, %v1760
    %v1762 = vpop.f32.mrf.mxu0
    %1763 = vmatprep.mubr.f32.mxu0 0.0
    %1764 = vmatmul.mubr.f32.gmra.mxu0 %v1615
    %v1765 = vpop.f32.mrf.mxu0
    %v1766 = vadd.f32 %v89, %v1765
    %v1767 = vpop.f32.mrf.mxu0
    %1768 = vmatprep.mubr.f32.mxu0 0.0
    %1769 = vmatmul.mubr.f32.gmra.mxu0 %v1617
    %v1770 = vpop.f32.mrf.mxu0
    %v1771 = vadd.f32 %v90, %v1770
    %v1772 = vpop.f32.mrf.mxu0
    %1773 = vmatprep.mubr.f32.mxu0 0.0
    %1774 = vmatmul.mubr.f32.gmra.mxu0 %v1619
    %v1775 = vpop.f32.mrf.mxu0
    %v1776 = vadd.f32 %v91, %v1775
    %v1777 = vpop.f32.mrf.mxu0
    %1778 = vmatprep.mubr.f32.mxu0 0.0
    %1779 = vmatmul.mubr.f32.gmra.mxu0 %v1621
    %v1780 = vpop.f32.mrf.mxu0
    %v1781 = vadd.f32 %v92, %v1780
    %v1782 = vpop.f32.mrf.mxu0
    %1783 = vdwg.mxu0
    %1784 = vmax.xlane.f32.xlu0 %v1706
    %v1785 = vpop.xlane.xlu0 %1784
    %1786 = vmax.xlane.f32.xlu0 %v1711
    %v1787 = vpop.xlane.xlu0 %1786
    %1788 = vmax.xlane.f32.xlu0 %v1716
    %v1789 = vpop.xlane.xlu0 %1788
    %1790 = vmax.xlane.f32.xlu0 %v1721
    %v1791 = vpop.xlane.xlu0 %1790
    %1792 = vmax.xlane.f32.xlu0 %v1726
    %v1793 = vpop.xlane.xlu0 %1792
    %1794 = vmax.xlane.f32.xlu0 %v1731
    %v1795 = vpop.xlane.xlu0 %1794
    %1796 = vmax.xlane.f32.xlu0 %v1736
    %v1797 = vpop.xlane.xlu0 %1796
    %1798 = vmax.xlane.f32.xlu0 %v1741
    %v1799 = vpop.xlane.xlu0 %1798
    %1800 = vmax.xlane.f32.xlu0 %v1746
    %v1801 = vpop.xlane.xlu0 %1800
    %1802 = vmax.xlane.f32.xlu0 %v1751
    %v1803 = vpop.xlane.xlu0 %1802
    %1804 = vmax.xlane.f32.xlu0 %v1756
    %v1805 = vpop.xlane.xlu0 %1804
    %1806 = vmax.xlane.f32.xlu0 %v1761
    %v1807 = vpop.xlane.xlu0 %1806
    %1808 = vmax.xlane.f32.xlu0 %v1766
    %v1809 = vpop.xlane.xlu0 %1808
    %1810 = vmax.xlane.f32.xlu0 %v1771
    %v1811 = vpop.xlane.xlu0 %1810
    %1812 = vmax.xlane.f32.xlu0 %v1776
    %v1813 = vpop.xlane.xlu0 %1812
    %1814 = vmax.xlane.f32.xlu0 %v1781
    %v1815 = vpop.xlane.xlu0 %1814
    %v1816 = vsub.f32 %v1706, %v1785
    %v1817 = vsub.f32 %v1711, %v1787
    %v1818 = vsub.f32 %v1716, %v1789
    %v1819 = vsub.f32 %v1721, %v1791
    %v1820 = vsub.f32 %v1726, %v1793
    %v1821 = vsub.f32 %v1731, %v1795
    %v1822 = vsub.f32 %v1736, %v1797
    %v1823 = vsub.f32 %v1741, %v1799
    %v1824 = vsub.f32 %v1746, %v1801
    %v1825 = vsub.f32 %v1751, %v1803
    %v1826 = vsub.f32 %v1756, %v1805
    %v1827 = vsub.f32 %v1761, %v1807
    %v1828 = vsub.f32 %v1766, %v1809
    %v1829 = vsub.f32 %v1771, %v1811
    %v1830 = vsub.f32 %v1776, %v1813
    %v1831 = vsub.f32 %v1781, %v1815
    %v1832 = vmul.f32 %v1816, 1.442695
    %v1833 = vpow.pop %v1832
    %v1834 = vmul.f32 %v1817, 1.442695
    %v1835 = vpow.pop %v1834
    %v1836 = vmul.f32 %v1818, 1.442695
    %v1837 = vpow.pop %v1836
    %v1838 = vmul.f32 %v1819, 1.442695
    %v1839 = vpow.pop %v1838
    %v1840 = vmul.f32 %v1820, 1.442695
    %v1841 = vpow.pop %v1840
    %v1842 = vmul.f32 %v1821, 1.442695
    %v1843 = vpow.pop %v1842
    %v1844 = vmul.f32 %v1822, 1.442695
    %v1845 = vpow.pop %v1844
    %v1846 = vmul.f32 %v1823, 1.442695
    %v1847 = vpow.pop %v1846
    %v1848 = vmul.f32 %v1824, 1.442695
    %v1849 = vpow.pop %v1848
    %v1850 = vmul.f32 %v1825, 1.442695
    %v1851 = vpow.pop %v1850
    %v1852 = vmul.f32 %v1826, 1.442695
    %v1853 = vpow.pop %v1852
    %v1854 = vmul.f32 %v1827, 1.442695
    %v1855 = vpow.pop %v1854
    %v1856 = vmul.f32 %v1828, 1.442695
    %v1857 = vpow.pop %v1856
    %v1858 = vmul.f32 %v1829, 1.442695
    %v1859 = vpow.pop %v1858
    %v1860 = vmul.f32 %v1830, 1.442695
    %v1861 = vpow.pop %v1860
    %v1862 = vmul.f32 %v1831, 1.442695
    %v1863 = vpow.pop %v1862
    %1864 = vadd.xlane.f32.xlu0 %v1833
    %v1865 = vpop.xlane.xlu0 %1864
    %1866 = vadd.xlane.f32.xlu0 %v1835
    %v1867 = vpop.xlane.xlu0 %1866
    %1868 = vadd.xlane.f32.xlu0 %v1837
    %v1869 = vpop.xlane.xlu0 %1868
    %1870 = vadd.xlane.f32.xlu0 %v1839
    %v1871 = vpop.xlane.xlu0 %1870
    %1872 = vadd.xlane.f32.xlu0 %v1841
    %v1873 = vpop.xlane.xlu0 %1872
    %1874 = vadd.xlane.f32.xlu0 %v1843
    %v1875 = vpop.xlane.xlu0 %1874
    %1876 = vadd.xlane.f32.xlu0 %v1845
    %v1877 = vpop.xlane.xlu0 %1876
    %1878 = vadd.xlane.f32.xlu0 %v1847
    %v1879 = vpop.xlane.xlu0 %1878
    %1880 = vadd.xlane.f32.xlu0 %v1849
    %v1881 = vpop.xlane.xlu0 %1880
    %1882 = vadd.xlane.f32.xlu0 %v1851
    %v1883 = vpop.xlane.xlu0 %1882
    %1884 = vadd.xlane.f32.xlu0 %v1853
    %v1885 = vpop.xlane.xlu0 %1884
    %1886 = vadd.xlane.f32.xlu0 %v1855
    %v1887 = vpop.xlane.xlu0 %1886
    %1888 = vadd.xlane.f32.xlu0 %v1857
    %v1889 = vpop.xlane.xlu0 %1888
    %1890 = vadd.xlane.f32.xlu0 %v1859
    %v1891 = vpop.xlane.xlu0 %1890
    %1892 = vadd.xlane.f32.xlu0 %v1861
    %v1893 = vpop.xlane.xlu0 %1892
    %1894 = vadd.xlane.f32.xlu0 %v1863
    %v1895 = vpop.xlane.xlu0 %1894
    %v1896 = vrcp.pop %v1865
    %v1897 = vrcp.pop %v1867
    %v1898 = vrcp.pop %v1869
    %v1899 = vrcp.pop %v1871
    %v1900 = vrcp.pop %v1873
    %v1901 = vrcp.pop %v1875
    %v1902 = vrcp.pop %v1877
    %v1903 = vrcp.pop %v1879
    %v1904 = vrcp.pop %v1881
    %v1905 = vrcp.pop %v1883
    %v1906 = vrcp.pop %v1885
    %v1907 = vrcp.pop %v1887
    %v1908 = vrcp.pop %v1889
    %v1909 = vrcp.pop %v1891
    %v1910 = vrcp.pop %v1893
    %v1911 = vrcp.pop %v1895
    %v1912 = vmul.f32 %v1833, %v1896
    %v1913 = vmul.f32 %v1835, %v1897
    %v1914 = vmul.f32 %v1837, %v1898
    %v1915 = vmul.f32 %v1839, %v1899
    %v1916 = vmul.f32 %v1841, %v1900
    %v1917 = vmul.f32 %v1843, %v1901
    %v1918 = vmul.f32 %v1845, %v1902
    %v1919 = vmul.f32 %v1847, %v1903
    %v1920 = vmul.f32 %v1849, %v1904
    %v1921 = vmul.f32 %v1851, %v1905
    %v1922 = vmul.f32 %v1853, %v1906
    %v1923 = vmul.f32 %v1855, %v1907
    %v1924 = vmul.f32 %v1857, %v1908
    %v1925 = vmul.f32 %v1859, %v1909
    %v1926 = vmul.f32 %v1861, %v1910
    %v1927 = vmul.f32 %v1863, %v1911
    %1928 = vrot.lane.b32.xlu0 %v1489, 32
    %v1929 = vpop.permute.xlu0 %1928
    %1930 = vrot.lane.b32.xlu0 %v1494, 32
    %v1931 = vpop.permute.xlu0 %1930
    %1932 = vrot.lane.b32.xlu0 %v1564, 32
    %v1933 = vpop.permute.xlu0 %1932
    %1934 = vrot.lane.b32.xlu0 %v1566, 32
    %v1935 = vpop.permute.xlu0 %1934
    %1936 = vrot.lane.b32.xlu0 %v1568, 32
    %v1937 = vpop.permute.xlu0 %1936
    %1938 = vrot.lane.b32.xlu0 %v1570, 32
    %v1939 = vpop.permute.xlu0 %1938
    %1940 = vrot.lane.b32.xlu0 %v1572, 32
    %v1941 = vpop.permute.xlu0 %1940
    %1942 = vrot.lane.b32.xlu0 %v1574, 32
    %v1943 = vpop.permute.xlu0 %1942
    %1952 = vmatprep.subr.mxu0 0.0
    %1953 = vmatpush1.msra.mxu0 %v1943
    %1954 = vmatprep.subr.mxu0 0.0
    %1955 = vmatpush1.msra.mxu0 %v1941
    %1956 = vmatprep.subr.mxu0 0.0
    %1957 = vmatpush1.msra.mxu0 %v1943
    %1958 = vmatprep.subr.mxu0 0.0
    %1959 = vmatpush1.msra.mxu0 %v1941
    %1960 = vmatprep.subr.mxu0 0.0
    %1961 = vmatpush1.msra.mxu0 %v1939
    %1962 = vmatprep.subr.mxu0 0.0
    %1963 = vmatpush1.msra.mxu0 %v1937
    %1964 = vmatprep.subr.mxu0 0.0
    %1965 = vmatpush1.msra.mxu0 %v1939
    %1966 = vmatprep.subr.mxu0 0.0
    %1967 = vmatpush1.msra.mxu0 %v1937
    %1968 = vmatprep.subr.mxu0 0.0
    %1969 = vmatpush1.msra.mxu0 %v1935
    %1970 = vmatprep.subr.mxu0 0.0
    %1971 = vmatpush1.msra.mxu0 %v1933
    %1972 = vmatprep.subr.mxu0 0.0
    %1973 = vmatpush1.msra.mxu0 %v1935
    %1974 = vmatprep.subr.mxu0 0.0
    %1975 = vmatpush1.msra.mxu0 %v1933
    %1976 = vmatprep.subr.mxu0 0.0
    %1977 = vmatpush1.msra.mxu0 %v1931
    %1978 = vmatprep.subr.mxu0 0.0
    %1979 = vmatpush1.msra.mxu0 %v1929
    %1980 = vmatprep.subr.mxu0 0.0
    %1981 = vmatpush1.msra.mxu0 %v1931
    %1982 = vmatprep.subr.mxu0 0.0
    %1983 = vmatpush1.msra.mxu0 %v1929
    %1984 = vmatprep.subr.mxu0 0.0
    %1985 = vmatpush2.msra.mxu0 0.0
    %1986 = vmatprep.subr.mxu0 0.0
    %1987 = vmatpush2.msra.mxu0 0.0
    %1988 = vmatprep.subr.mxu0 0.0
    %1989 = vmatpush2.msra.mxu0 0.0
    %1990 = vmatprep.subr.mxu0 0.0
    %1991 = vmatpush2.msra.mxu0 0.0
    %1992 = vmatprep.subr.mxu0 0.0
    %1993 = vmatpush2.msra.mxu0 0.0
    %1994 = vmatprep.subr.mxu0 0.0
    %1995 = vmatpush2.msra.mxu0 0.0
    %1996 = vmatprep.subr.mxu0 0.0
    %1997 = vmatpush2.msra.mxu0 0.0
    %1998 = vmatprep.subr.mxu0 0.0
    %1999 = vmatpush2.msra.mxu0 0.0
    %2000 = vmatprep.subr.mxu0 0.0
    %2001 = vmatpush2.msra.mxu0 0.0
    %2002 = vmatprep.subr.mxu0 0.0
    %2003 = vmatpush2.msra.mxu0 0.0
    %2004 = vmatprep.subr.mxu0 0.0
    %2005 = vmatpush2.msra.mxu0 0.0
    %2006 = vmatprep.subr.mxu0 0.0
    %2007 = vmatpush2.msra.mxu0 0.0
    %2008 = vmatprep.subr.mxu0 0.0
    %2009 = vmatpush2.msra.mxu0 0.0
    %2010 = vmatprep.subr.mxu0 0.0
    %2011 = vmatpush2.msra.mxu0 0.0
    %2012 = vmatprep.subr.mxu0 0.0
    %2013 = vmatpush2.msra.mxu0 0.0
    %2014 = vmatprep.subr.mxu0 0.0
    %2015 = vmatpush2.msra.mxu0 0.0
    %2016 = vmatprep.mubr.f32.mxu0 0.0
    %2017 = vmatmul.mubr.f32.gmra.mxu0 %v1912
    %v2018 = vpop.f32.mrf.mxu0
    %v2019 = vadd.f32 0.0, %v2018
    %v2020 = vpop.f32.mrf.mxu0
    %2021 = vmatprep.mubr.f32.mxu0 0.0
    %2022 = vmatmul.mubr.f32.gmra.mxu0 %v1913
    %v2023 = vpop.f32.mrf.mxu0
    %v2024 = vadd.f32 0.0, %v2023
    %v2025 = vpop.f32.mrf.mxu0
    %2026 = vmatprep.mubr.f32.mxu0 0.0
    %2027 = vmatmul.mubr.f32.gmra.mxu0 %v1914
    %v2028 = vpop.f32.mrf.mxu0
    %v2029 = vadd.f32 0.0, %v2028
    %v2030 = vpop.f32.mrf.mxu0
    %2031 = vmatprep.mubr.f32.mxu0 0.0
    %2032 = vmatmul.mubr.f32.gmra.mxu0 %v1915
    %v2033 = vpop.f32.mrf.mxu0
    %v2034 = vadd.f32 0.0, %v2033
    %v2035 = vpop.f32.mrf.mxu0
    %2036 = vmatprep.mubr.f32.mxu0 0.0
    %2037 = vmatmul.mubr.f32.gmra.mxu0 %v1916
    %v2038 = vpop.f32.mrf.mxu0
    %v2039 = vadd.f32 0.0, %v2038
    %v2040 = vpop.f32.mrf.mxu0
    %2041 = vmatprep.mubr.f32.mxu0 0.0
    %2042 = vmatmul.mubr.f32.gmra.mxu0 %v1917
    %v2043 = vpop.f32.mrf.mxu0
    %v2044 = vadd.f32 0.0, %v2043
    %v2045 = vpop.f32.mrf.mxu0
    %2046 = vmatprep.mubr.f32.mxu0 0.0
    %2047 = vmatmul.mubr.f32.gmra.mxu0 %v1918
    %v2048 = vpop.f32.mrf.mxu0
    %v2049 = vadd.f32 0.0, %v2048
    %v2050 = vpop.f32.mrf.mxu0
    %2051 = vmatprep.mubr.f32.mxu0 0.0
    %2052 = vmatmul.mubr.f32.gmra.mxu0 %v1919
    %v2053 = vpop.f32.mrf.mxu0
    %v2054 = vadd.f32 0.0, %v2053
    %v2055 = vpop.f32.mrf.mxu0
    %2056 = vmatprep.mubr.f32.mxu0 0.0
    %2057 = vmatmul.mubr.f32.gmra.mxu0 %v1920
    %v2058 = vpop.f32.mrf.mxu0
    %v2059 = vadd.f32 0.0, %v2058
    %v2060 = vpop.f32.mrf.mxu0
    %2061 = vmatprep.mubr.f32.mxu0 0.0
    %2062 = vmatmul.mubr.f32.gmra.mxu0 %v1921
    %v2063 = vpop.f32.mrf.mxu0
    %v2064 = vadd.f32 0.0, %v2063
    %v2065 = vpop.f32.mrf.mxu0
    %2066 = vmatprep.mubr.f32.mxu0 0.0
    %2067 = vmatmul.mubr.f32.gmra.mxu0 %v1922
    %v2068 = vpop.f32.mrf.mxu0
    %v2069 = vadd.f32 0.0, %v2068
    %v2070 = vpop.f32.mrf.mxu0
    %2071 = vmatprep.mubr.f32.mxu0 0.0
    %2072 = vmatmul.mubr.f32.gmra.mxu0 %v1923
    %v2073 = vpop.f32.mrf.mxu0
    %v2074 = vadd.f32 0.0, %v2073
    %v2075 = vpop.f32.mrf.mxu0
    %2076 = vmatprep.mubr.f32.mxu0 0.0
    %2077 = vmatmul.mubr.f32.gmra.mxu0 %v1924
    %v2078 = vpop.f32.mrf.mxu0
    %v2079 = vadd.f32 0.0, %v2078
    %v2080 = vpop.f32.mrf.mxu0
    %2081 = vmatprep.mubr.f32.mxu0 0.0
    %2082 = vmatmul.mubr.f32.gmra.mxu0 %v1925
    %v2083 = vpop.f32.mrf.mxu0
    %v2084 = vadd.f32 0.0, %v2083
    %v2085 = vpop.f32.mrf.mxu0
    %2086 = vmatprep.mubr.f32.mxu0 0.0
    %2087 = vmatmul.mubr.f32.gmra.mxu0 %v1926
    %v2088 = vpop.f32.mrf.mxu0
    %v2089 = vadd.f32 0.0, %v2088
    %v2090 = vpop.f32.mrf.mxu0
    %2091 = vmatprep.mubr.f32.mxu0 0.0
    %2092 = vmatmul.mubr.f32.gmra.mxu0 %v1927
    %v2093 = vpop.f32.mrf.mxu0
    %v2094 = vadd.f32 0.0, %v2093
    %v2095 = vpop.f32.mrf.mxu0
    %2096 = vdwg.mxu0
    %2099 = vrot.lane.b32.xlu0 %v2029, 4
    %v2100 = vpop.permute.xlu0 %2099
    %2101 = vrot.lane.b32.xlu0 %v2034, 4
    %v2102 = vpop.permute.xlu0 %2101
    %2107 = vrot.lane.b32.xlu0 %v2039, 8
    %v2108 = vpop.permute.xlu0 %2107
    %2109 = vrot.lane.b32.xlu0 %v2044, 8
    %v2110 = vpop.permute.xlu0 %2109
    %2115 = vrot.lane.b32.xlu0 %v2049, 12
    %v2116 = vpop.permute.xlu0 %2115
    %2117 = vrot.lane.b32.xlu0 %v2054, 12
    %v2118 = vpop.permute.xlu0 %2117
    %2123 = vrot.lane.b32.xlu0 %v2059, 16
    %v2124 = vpop.permute.xlu0 %2123
    %2125 = vrot.lane.b32.xlu0 %v2064, 16
    %v2126 = vpop.permute.xlu0 %2125
    %2131 = vrot.lane.b32.xlu0 %v2069, 20
    %v2132 = vpop.permute.xlu0 %2131
    %2133 = vrot.lane.b32.xlu0 %v2074, 20
    %v2134 = vpop.permute.xlu0 %2133
    %2139 = vrot.lane.b32.xlu0 %v2079, 24
    %v2140 = vpop.permute.xlu0 %2139
    %2141 = vrot.lane.b32.xlu0 %v2084, 24
    %v2142 = vpop.permute.xlu0 %2141
    %2147 = vrot.lane.b32.xlu0 %v2089, 28
    %v2148 = vpop.permute.xlu0 %2147
    %2149 = vrot.lane.b32.xlu0 %v2094, 28
    %v2150 = vpop.permute.xlu0 %2149
    %v2153 = vsel %vm421, %v2019, %v2100
    %v2154 = vsel %vm421, %v2024, %v2102
    %v2155 = vsel %vm986, %v2153, %v2108
    %v2156 = vsel %vm986, %v2154, %v2110
    %v2157 = vsel %vm989, %v2155, %v2116
    %v2158 = vsel %vm989, %v2156, %v2118
    %v2159 = vsel %vm992, %v2157, %v2124
    %v2160 = vsel %vm992, %v2158, %v2126
    %v2161 = vsel %vm995, %v2159, %v2132
    %v2162 = vsel %vm995, %v2160, %v2134
    %v2163 = vsel %vm998, %v2161, %v2140
    %v2164 = vsel %vm998, %v2162, %v2142
    %v2165 = vsel %vm1001, %v2163, %v2148
    %v2166 = vsel %vm1001, %v2164, %v2150
    %v2168 = vsel %vm224, %v2165, 0
    %v2171 = vsel %vm224, %v2166, 0
    %2173 = vmatprep.subr.mxu0 0.0
    %2174 = vmatpush1.msra.mxu0 0.0
    %2175 = vmatprep.subr.mxu0 0.0
    %2176 = vmatpush1.msra.mxu0 0.0
    %2177 = vmatprep.subr.mxu0 0.0
    %2178 = vmatpush1.msra.mxu0 0.0
    %2179 = vmatprep.subr.mxu0 0.0
    %2180 = vmatpush1.msra.mxu0 0.0
    %2181 = vmatprep.subr.mxu0 0.0
    %2182 = vmatpush1.msra.mxu0 0.0
    %2183 = vmatprep.subr.mxu0 0.0
    %2184 = vmatpush1.msra.mxu0 0.0
    %2185 = vmatprep.subr.mxu0 0.0
    %2186 = vmatpush1.msra.mxu0 0.0
    %2187 = vmatprep.subr.mxu0 0.0
    %2188 = vmatpush1.msra.mxu0 0.0
    %2189 = vmatprep.subr.mxu0 0.0
    %2190 = vmatpush1.msra.mxu0 0.0
    %2191 = vmatprep.subr.mxu0 0.0
    %2192 = vmatpush1.msra.mxu0 0.0
    %2193 = vmatprep.subr.mxu0 0.0
    %2194 = vmatpush1.msra.mxu0 0.0
    %2195 = vmatprep.subr.mxu0 0.0
    %2196 = vmatpush1.msra.mxu0 0.0
    %2197 = vmatprep.subr.mxu0 0.0
    %2198 = vmatpush1.msra.mxu0 %v114
    %2199 = vmatprep.subr.mxu0 0.0
    %2200 = vmatpush1.msra.mxu0 %v109
    %2201 = vmatprep.subr.mxu0 0.0
    %2202 = vmatpush1.msra.mxu0 %v104
    %2203 = vmatprep.subr.mxu0 0.0
    %2204 = vmatpush1.msra.mxu0 %v99
    %2205 = vmatprep.subr.mxu0 0.0
    %2206 = vmatpush2.msra.mxu0 0.0
    %2207 = vmatprep.subr.mxu0 0.0
    %2208 = vmatpush2.msra.mxu0 0.0
    %2209 = vmatprep.subr.mxu0 0.0
    %2210 = vmatpush2.msra.mxu0 0.0
    %2211 = vmatprep.subr.mxu0 0.0
    %2212 = vmatpush2.msra.mxu0 0.0
    %2213 = vmatprep.subr.mxu0 0.0
    %2214 = vmatpush2.msra.mxu0 0.0
    %2215 = vmatprep.subr.mxu0 0.0
    %2216 = vmatpush2.msra.mxu0 0.0
    %2217 = vmatprep.subr.mxu0 0.0
    %2218 = vmatpush2.msra.mxu0 0.0
    %2219 = vmatprep.subr.mxu0 0.0
    %2220 = vmatpush2.msra.mxu0 0.0
    %2221 = vmatprep.subr.mxu0 0.0
    %2222 = vmatpush2.msra.mxu0 0.0
    %2223 = vmatprep.subr.mxu0 0.0
    %2224 = vmatpush2.msra.mxu0 0.0
    %2225 = vmatprep.subr.mxu0 0.0
    %2226 = vmatpush2.msra.mxu0 0.0
    %2227 = vmatprep.subr.mxu0 0.0
    %2228 = vmatpush2.msra.mxu0 0.0
    %2229 = vmatprep.subr.mxu0 0.0
    %2230 = vmatpush2.msra.mxu0 0.0
    %2231 = vmatprep.subr.mxu0 0.0
    %2232 = vmatpush2.msra.mxu0 0.0
    %2233 = vmatprep.subr.mxu0 0.0
    %2234 = vmatpush2.msra.mxu0 0.0
    %2235 = vmatprep.subr.mxu0 0.0
    %2236 = vmatpush2.msra.mxu0 0.0
    %2237 = vmatprep.mubr.f32.mxu0 0.0
    %2238 = vmatmul.mubr.f32.gmra.mxu0 %v2168
    %v2239 = vpop.f32.mrf.mxu0
    %v2240 = vadd.f32 0.0, %v2239
    %v2241 = vpop.f32.mrf.mxu0
    %2242 = vmatprep.mubr.f32.mxu0 0.0
    %2243 = vmatmul.mubr.f32.gmra.mxu0 %v2171
    %v2244 = vpop.f32.mrf.mxu0
    %v2245 = vadd.f32 0.0, %v2244
    %v2246 = vpop.f32.mrf.mxu0
    %2247 = vdwg.mxu0
    %v2248 = vadd.f32 %v1388, %v2240
    %v2249 = vadd.f32 %v1389, %v2245
    %v2250 = vmul.f32 %v2248, %v2248
    %v2251 = vmul.f32 %v2249, %v2249
    %v2252 = vsel %vm224, %v2250, 0.0
    %2253 = vadd.xlane.f32.xlu0 %v2252
    %v2254 = vpop.xlane.xlu0 %2253
    %v2255 = vsel %vm224, %v2251, 0.0
    %2256 = vadd.xlane.f32.xlu0 %v2255
    %v2257 = vpop.xlane.xlu0 %2256
    %v2258 = vmul.f32 %v2254, %v231
    %v2259 = vmul.f32 %v2257, %v231
    %v2260 = vadd.f32 %v2258, 1e-05
    %v2261 = vadd.f32 %v2259, 1e-05
    %v2262 = vrsqrt.pop %v2260
    %v2263 = vrsqrt.pop %v2261
    %v2264 = vmul.f32 %v2248, %v2262
    %v2265 = vmul.f32 %v2249, %v2263
    %v2266 = vlaneseq
    %v2267 = vshrl.u32 %v2266, 7
    %v2268 = vsub.s32 3, %v2267
    %v2269 = vrot.slane %v95, %v2268
    %v2270 = vmul.f32 %v2269, %v2264
    %v2271 = vmul.f32 %v2269, %v2265
    %2280 = vrot.lane.b32.xlu0 %v99, 96
    %v2281 = vpop.permute.xlu0 %2280
    %2282 = vrot.lane.b32.xlu0 %v100, 96
    %v2283 = vpop.permute.xlu0 %2282
    %2284 = vrot.lane.b32.xlu0 %v104, 96
    %v2285 = vpop.permute.xlu0 %2284
    %2286 = vrot.lane.b32.xlu0 %v105, 96
    %v2287 = vpop.permute.xlu0 %2286
    %2288 = vrot.lane.b32.xlu0 %v109, 96
    %v2289 = vpop.permute.xlu0 %2288
    %2290 = vrot.lane.b32.xlu0 %v110, 96
    %v2291 = vpop.permute.xlu0 %2290
    %2292 = vrot.lane.b32.xlu0 %v114, 96
    %v2293 = vpop.permute.xlu0 %2292
    %2294 = vrot.lane.b32.xlu0 %v115, 96
    %v2295 = vpop.permute.xlu0 %2294
    %vm2296 = vcmask 785408
    %v2297 = vsel %vm2296, %v2281, %v2283
    %v2298 = vsel %vm2296, %v2285, %v2287
    %v2299 = vsel %vm2296, %v2289, %v2291
    %v2300 = vsel %vm2296, %v2293, %v2295
    %v2306 = vsel %vm224, %v2270, 0
    %v2309 = vsel %vm224, %v2271, 0
    %2311 = vmatprep.subr.mxu0 0.0
    %2312 = vmatpush1.msra.mxu0 0.0
    %2313 = vmatprep.subr.mxu0 0.0
    %2314 = vmatpush1.msra.mxu0 0.0
    %2315 = vmatprep.subr.mxu0 0.0
    %2316 = vmatpush1.msra.mxu0 0.0
    %2317 = vmatprep.subr.mxu0 0.0
    %2318 = vmatpush1.msra.mxu0 0.0
    %2319 = vmatprep.subr.mxu0 0.0
    %2320 = vmatpush1.msra.mxu0 0.0
    %2321 = vmatprep.subr.mxu0 0.0
    %2322 = vmatpush1.msra.mxu0 0.0
    %2323 = vmatprep.subr.mxu0 0.0
    %2324 = vmatpush1.msra.mxu0 0.0
    %2325 = vmatprep.subr.mxu0 0.0
    %2326 = vmatpush1.msra.mxu0 0.0
    %2327 = vmatprep.subr.mxu0 0.0
    %2328 = vmatpush1.msra.mxu0 0.0
    %2329 = vmatprep.subr.mxu0 0.0
    %2330 = vmatpush1.msra.mxu0 0.0
    %2331 = vmatprep.subr.mxu0 0.0
    %2332 = vmatpush1.msra.mxu0 0.0
    %2333 = vmatprep.subr.mxu0 0.0
    %2334 = vmatpush1.msra.mxu0 0.0
    %2335 = vmatprep.subr.mxu0 0.0
    %2336 = vmatpush1.msra.mxu0 %v2300
    %2337 = vmatprep.subr.mxu0 0.0
    %2338 = vmatpush1.msra.mxu0 %v2299
    %2339 = vmatprep.subr.mxu0 0.0
    %2340 = vmatpush1.msra.mxu0 %v2298
    %2341 = vmatprep.subr.mxu0 0.0
    %2342 = vmatpush1.msra.mxu0 %v2297
    %2343 = vmatprep.subr.mxu0 0.0
    %2344 = vmatpush2.msra.mxu0 0.0
    %2345 = vmatprep.subr.mxu0 0.0
    %2346 = vmatpush2.msra.mxu0 0.0
    %2347 = vmatprep.subr.mxu0 0.0
    %2348 = vmatpush2.msra.mxu0 0.0
    %2349 = vmatprep.subr.mxu0 0.0
    %2350 = vmatpush2.msra.mxu0 0.0
    %2351 = vmatprep.subr.mxu0 0.0
    %2352 = vmatpush2.msra.mxu0 0.0
    %2353 = vmatprep.subr.mxu0 0.0
    %2354 = vmatpush2.msra.mxu0 0.0
    %2355 = vmatprep.subr.mxu0 0.0
    %2356 = vmatpush2.msra.mxu0 0.0
    %2357 = vmatprep.subr.mxu0 0.0
    %2358 = vmatpush2.msra.mxu0 0.0
    %2359 = vmatprep.subr.mxu0 0.0
    %2360 = vmatpush2.msra.mxu0 0.0
    %2361 = vmatprep.subr.mxu0 0.0
    %2362 = vmatpush2.msra.mxu0 0.0
    %2363 = vmatprep.subr.mxu0 0.0
    %2364 = vmatpush2.msra.mxu0 0.0
    %2365 = vmatprep.subr.mxu0 0.0
    %2366 = vmatpush2.msra.mxu0 0.0
    %2367 = vmatprep.subr.mxu0 0.0
    %2368 = vmatpush2.msra.mxu0 0.0
    %2369 = vmatprep.subr.mxu0 0.0
    %2370 = vmatpush2.msra.mxu0 0.0
    %2371 = vmatprep.subr.mxu0 0.0
    %2372 = vmatpush2.msra.mxu0 0.0
    %2373 = vmatprep.subr.mxu0 0.0
    %2374 = vmatpush2.msra.mxu0 0.0
    %2375 = vmatprep.mubr.f32.mxu0 0.0
    %2376 = vmatmul.mubr.f32.gmra.mxu0 %v2306
    %v2377 = vpop.f32.mrf.mxu0
    %v2378 = vadd.f32 0.0, %v2377
    %v2379 = vpop.f32.mrf.mxu0
    %2380 = vmatprep.mubr.f32.mxu0 0.0
    %2381 = vmatmul.mubr.f32.gmra.mxu0 %v2309
    %v2382 = vpop.f32.mrf.mxu0
    %v2383 = vadd.f32 0.0, %v2382
    %v2384 = vpop.f32.mrf.mxu0
    %2385 = vdwg.mxu0
    %v2386 = vxor.u32 %v2378, 2147483648
    %v2387 = vxor.u32 %v2383, 2147483648
    %v2388 = vmul.f32 %v2386, 1.442695
    %v2389 = vpow.pop %v2388
    %v2390 = vmul.f32 %v2387, 1.442695
    %v2391 = vpow.pop %v2390
    %v2392 = vadd.f32 %v2389, 1.0
    %v2393 = vadd.f32 %v2391, 1.0
    %v2394 = vrcp.pop %v2392
    %v2395 = vmul.f32 1.0, %v2394
    %v2396 = vrcp.pop %v2393
    %v2397 = vmul.f32 1.0, %v2396
    %v2398 = vmul.f32 %v2378, %v2395
    %v2399 = vmul.f32 %v2383, %v2397
    %2402 = vrot.lane.b32.xlu0 %v2378, 64
    %v2403 = vpop.permute.xlu0 %2402
    %2404 = vrot.lane.b32.xlu0 %v2383, 64
    %v2405 = vpop.permute.xlu0 %2404
    %v2408 = vmul.f32 %v2398, %v2403
    %v2409 = vmul.f32 %v2399, %v2405
    %2410 = vrot.lane.b32.xlu0 %v116, 64
    %v2411 = vpop.permute.xlu0 %2410
    %2412 = vrot.lane.b32.xlu0 %v117, 64
    %v2413 = vpop.permute.xlu0 %2412
    %2414 = vrot.lane.b32.xlu0 %v118, 64
    %v2415 = vpop.permute.xlu0 %2414
    %2416 = vrot.lane.b32.xlu0 %v119, 64
    %v2417 = vpop.permute.xlu0 %2416
    %2418 = vrot.lane.b32.xlu0 %v120, 64
    %v2419 = vpop.permute.xlu0 %2418
    %2420 = vrot.lane.b32.xlu0 %v121, 64
    %v2421 = vpop.permute.xlu0 %2420
    %2422 = vrot.lane.b32.xlu0 %v122, 64
    %v2423 = vpop.permute.xlu0 %2422
    %2424 = vrot.lane.b32.xlu0 %v123, 64
    %v2425 = vpop.permute.xlu0 %2424
    %v2435 = vsel %vm140, %v2408, 0
    %v2438 = vsel %vm140, %v2409, 0
    %2440 = vmatprep.subr.mxu0 0.0
    %2441 = vmatpush1.msra.mxu0 0.0
    %2442 = vmatprep.subr.mxu0 0.0
    %2443 = vmatpush1.msra.mxu0 0.0
    %2444 = vmatprep.subr.mxu0 0.0
    %2445 = vmatpush1.msra.mxu0 0.0
    %2446 = vmatprep.subr.mxu0 0.0
    %2447 = vmatpush1.msra.mxu0 0.0
    %2448 = vmatprep.subr.mxu0 0.0
    %2449 = vmatpush1.msra.mxu0 0.0
    %2450 = vmatprep.subr.mxu0 0.0
    %2451 = vmatpush1.msra.mxu0 0.0
    %2452 = vmatprep.subr.mxu0 0.0
    %2453 = vmatpush1.msra.mxu0 0.0
    %2454 = vmatprep.subr.mxu0 0.0
    %2455 = vmatpush1.msra.mxu0 0.0
    %2456 = vmatprep.subr.mxu0 0.0
    %2457 = vmatpush1.msra.mxu0 %v2425
    %2458 = vmatprep.subr.mxu0 0.0
    %2459 = vmatpush1.msra.mxu0 %v2423
    %2460 = vmatprep.subr.mxu0 0.0
    %2461 = vmatpush1.msra.mxu0 %v2421
    %2462 = vmatprep.subr.mxu0 0.0
    %2463 = vmatpush1.msra.mxu0 %v2419
    %2464 = vmatprep.subr.mxu0 0.0
    %2465 = vmatpush1.msra.mxu0 %v2417
    %2466 = vmatprep.subr.mxu0 0.0
    %2467 = vmatpush1.msra.mxu0 %v2415
    %2468 = vmatprep.subr.mxu0 0.0
    %2469 = vmatpush1.msra.mxu0 %v2413
    %2470 = vmatprep.subr.mxu0 0.0
    %2471 = vmatpush1.msra.mxu0 %v2411
    %2472 = vmatprep.subr.mxu0 0.0
    %2473 = vmatpush2.msra.mxu0 0.0
    %2474 = vmatprep.subr.mxu0 0.0
    %2475 = vmatpush2.msra.mxu0 0.0
    %2476 = vmatprep.subr.mxu0 0.0
    %2477 = vmatpush2.msra.mxu0 0.0
    %2478 = vmatprep.subr.mxu0 0.0
    %2479 = vmatpush2.msra.mxu0 0.0
    %2480 = vmatprep.subr.mxu0 0.0
    %2481 = vmatpush2.msra.mxu0 0.0
    %2482 = vmatprep.subr.mxu0 0.0
    %2483 = vmatpush2.msra.mxu0 0.0
    %2484 = vmatprep.subr.mxu0 0.0
    %2485 = vmatpush2.msra.mxu0 0.0
    %2486 = vmatprep.subr.mxu0 0.0
    %2487 = vmatpush2.msra.mxu0 0.0
    %2488 = vmatprep.subr.mxu0 0.0
    %2489 = vmatpush2.msra.mxu0 0.0
    %2490 = vmatprep.subr.mxu0 0.0
    %2491 = vmatpush2.msra.mxu0 0.0
    %2492 = vmatprep.subr.mxu0 0.0
    %2493 = vmatpush2.msra.mxu0 0.0
    %2494 = vmatprep.subr.mxu0 0.0
    %2495 = vmatpush2.msra.mxu0 0.0
    %2496 = vmatprep.subr.mxu0 0.0
    %2497 = vmatpush2.msra.mxu0 0.0
    %2498 = vmatprep.subr.mxu0 0.0
    %2499 = vmatpush2.msra.mxu0 0.0
    %2500 = vmatprep.subr.mxu0 0.0
    %2501 = vmatpush2.msra.mxu0 0.0
    %2502 = vmatprep.subr.mxu0 0.0
    %2503 = vmatpush2.msra.mxu0 0.0
    %2504 = vmatprep.mubr.f32.mxu0 0.0
    %2505 = vmatmul.mubr.f32.gmra.mxu0 %v2435
    %v2506 = vpop.f32.mrf.mxu0
    %v2507 = vadd.f32 0.0, %v2506
    %v2508 = vpop.f32.mrf.mxu0
    %2509 = vmatprep.mubr.f32.mxu0 0.0
    %2510 = vmatmul.mubr.f32.gmra.mxu0 %v2438
    %v2511 = vpop.f32.mrf.mxu0
    %v2512 = vadd.f32 0.0, %v2511
    %v2513 = vpop.f32.mrf.mxu0
    %2514 = vdwg.mxu0
    %v2515 = vadd.f32 %v2248, %v2507
    %v2516 = vadd.f32 %v2249, %v2512
    %v2517 = vmul.f32 %v2515, %v2515
    %v2518 = vmul.f32 %v2516, %v2516
    %v2519 = vsel %vm224, %v2517, 0.0
    %2520 = vadd.xlane.f32.xlu0 %v2519
    %v2521 = vpop.xlane.xlu0 %2520
    %v2522 = vsel %vm224, %v2518, 0.0
    %2523 = vadd.xlane.f32.xlu0 %v2522
    %v2524 = vpop.xlane.xlu0 %2523
    %v2525 = vmul.f32 %v2521, %v231
    %v2526 = vmul.f32 %v2524, %v231
    %v2527 = vadd.f32 %v2525, 1e-05
    %v2528 = vadd.f32 %v2526, 1e-05
    %v2529 = vrsqrt.pop %v2527
    %v2530 = vrsqrt.pop %v2528
    %v2531 = vmul.f32 %v2515, %v2529
    %v2532 = vmul.f32 %v2516, %v2530
    %v2533 = vlaneseq
    %v2534 = vshrl.u32 %v2533, 7
    %v2535 = vsub.s32 4, %v2534
    %v2536 = vrot.slane %v95, %v2535
    %v2537 = vmul.f32 %v2536, %v2531
    %v2538 = vmul.f32 %v2536, %v2532
    %v2544 = vsel %vm224, %v2537, 0
    %v2547 = vsel %vm224, %v2538, 0
    %2549 = vmatprep.subr.mxu0 0.0
    %2550 = vmatpush1.msra.mxu0 0.0
    %2551 = vmatprep.subr.mxu0 0.0
    %2552 = vmatpush1.msra.mxu0 0.0
    %2553 = vmatprep.subr.mxu0 0.0
    %2554 = vmatpush1.msra.mxu0 0.0
    %2555 = vmatprep.subr.mxu0 0.0
    %2556 = vmatpush1.msra.mxu0 0.0
    %2557 = vmatprep.subr.mxu0 0.0
    %2558 = vmatpush1.msra.mxu0 0.0
    %2559 = vmatprep.subr.mxu0 0.0
    %2560 = vmatpush1.msra.mxu0 0.0
    %2561 = vmatprep.subr.mxu0 0.0
    %2562 = vmatpush1.msra.mxu0 0.0
    %2563 = vmatprep.subr.mxu0 0.0
    %2564 = vmatpush1.msra.mxu0 0.0
    %2565 = vmatprep.subr.mxu0 0.0
    %2566 = vmatpush1.msra.mxu0 0.0
    %2567 = vmatprep.subr.mxu0 0.0
    %2568 = vmatpush1.msra.mxu0 0.0
    %2569 = vmatprep.subr.mxu0 0.0
    %2570 = vmatpush1.msra.mxu0 0.0
    %2571 = vmatprep.subr.mxu0 0.0
    %2572 = vmatpush1.msra.mxu0 0.0
    %2573 = vmatprep.subr.mxu0 0.0
    %2574 = vmatpush1.msra.mxu0 %v2295
    %2575 = vmatprep.subr.mxu0 0.0
    %2576 = vmatpush1.msra.mxu0 %v2291
    %2577 = vmatprep.subr.mxu0 0.0
    %2578 = vmatpush1.msra.mxu0 %v2287
    %2579 = vmatprep.subr.mxu0 0.0
    %2580 = vmatpush1.msra.mxu0 %v2283
    %2581 = vmatprep.subr.mxu0 0.0
    %2582 = vmatpush2.msra.mxu0 0.0
    %2583 = vmatprep.subr.mxu0 0.0
    %2584 = vmatpush2.msra.mxu0 0.0
    %2585 = vmatprep.subr.mxu0 0.0
    %2586 = vmatpush2.msra.mxu0 0.0
    %2587 = vmatprep.subr.mxu0 0.0
    %2588 = vmatpush2.msra.mxu0 0.0
    %2589 = vmatprep.subr.mxu0 0.0
    %2590 = vmatpush2.msra.mxu0 0.0
    %2591 = vmatprep.subr.mxu0 0.0
    %2592 = vmatpush2.msra.mxu0 0.0
    %2593 = vmatprep.subr.mxu0 0.0
    %2594 = vmatpush2.msra.mxu0 0.0
    %2595 = vmatprep.subr.mxu0 0.0
    %2596 = vmatpush2.msra.mxu0 0.0
    %2597 = vmatprep.subr.mxu0 0.0
    %2598 = vmatpush2.msra.mxu0 0.0
    %2599 = vmatprep.subr.mxu0 0.0
    %2600 = vmatpush2.msra.mxu0 0.0
    %2601 = vmatprep.subr.mxu0 0.0
    %2602 = vmatpush2.msra.mxu0 0.0
    %2603 = vmatprep.subr.mxu0 0.0
    %2604 = vmatpush2.msra.mxu0 0.0
    %2605 = vmatprep.subr.mxu0 0.0
    %2606 = vmatpush2.msra.mxu0 0.0
    %2607 = vmatprep.subr.mxu0 0.0
    %2608 = vmatpush2.msra.mxu0 0.0
    %2609 = vmatprep.subr.mxu0 0.0
    %2610 = vmatpush2.msra.mxu0 0.0
    %2611 = vmatprep.subr.mxu0 0.0
    %2612 = vmatpush2.msra.mxu0 0.0
    %2613 = vmatprep.mubr.f32.mxu0 0.0
    %2614 = vmatmul.mubr.f32.gmra.mxu0 %v2544
    %v2615 = vpop.f32.mrf.mxu0
    %v2616 = vadd.f32 0.0, %v2615
    %v2617 = vpop.f32.mrf.mxu0
    %2618 = vmatprep.mubr.f32.mxu0 0.0
    %2619 = vmatmul.mubr.f32.gmra.mxu0 %v2547
    %v2620 = vpop.f32.mrf.mxu0
    %v2621 = vadd.f32 0.0, %v2620
    %v2622 = vpop.f32.mrf.mxu0
    %2623 = vdwg.mxu0
    %2624 = vst.msk [vmem:[#allocation10] sm:$0xff] %vm140, %v2616
    %2625 = vst.msk [vmem:[#allocation10 + $0x8] sm:$0xff] %vm140, %v2621
    // Predicated region
    $region42: #{mistral_forward.1} parent=1 // pred_check
      _
    $region43: #{mistral_forward.1} parent=1 // pred_check_branch
      %2627 = sbr.rel (0) target = $region45
    $region44: #{mistral_forward.1} parent=1 // pred_region
      %s2629 = ssub.s32 256, 256
      %2630 = vsyncadd [#allocation4], %s2629
      %s2631 = sshll.u32 [#allocation10], 4
      %s2632 = int_to_ptr.vmem [resolvable:$true] %s2631
      %2637 = dma.vmem_to_hbm [thread:$0]  %s2632, 256, %s6, [#allocation4], 128, 128, 8
    $region45: #{mistral_forward.1} parent=1 // pred_fallthru
      _
    // Predicated region
    $region46: #{mistral_forward.1} parent=1 // pred_check
      _
    $region47: #{mistral_forward.1} parent=1 // pred_check_branch
      %2639 = sbr.rel (0) target = $region49
    $region48: #{mistral_forward.1} parent=1 // pred_region
      %2640 = dma.done [#allocation4], 256
    $region49: #{mistral_forward.1} parent=1 // pred_fallthru
      _
    %2641 = vsyncpa [#allocation3], 1
    %2642 = vsyncpa [#allocation6], 1
    %2643 = vsyncpa [#allocation9], 1
    %2644 = vsyncpa [#allocation4], 1

</llo_original>
